<compile_context>
chip_gen: v5e
topology: v5e:2x2
jax: 0.10.0
libtpu: 0.0.40
codegen_flags: <defaults>
</compile_context>

<pallas_src>
import functools

import jax
import jax.numpy as jnp
from jax.experimental import pallas as pl
from jax.experimental.pallas import tpu as pltpu


def _round_up(x, m):
    return ((x + m - 1) // m) * m


def _elu(x):
    return jnp.where(x > 0, x, jnp.exp(x) - 1.0)


# ----------------------------------------------------------------------------
# Kernel
# ----------------------------------------------------------------------------
def q_global_kernel(s_ref, q_ref,
                    w1cat_ref, b1cat_ref, w2cat_ref, b2cat_ref,
                    bcat_ref, r1_ref, r2_ref, r3_ref,
                    out_ref, *, AHp, AJHp, AJp, HID1):
    s = s_ref[...]          # (TN, S)
    qp = q_ref[...]         # (TN, Ap)  agent q values, zero-padded to Ap lanes

    # ---- hypernetworks -----------------------------------------------------
    # Layer 1: six first-layer matmuls sharing LHS `s` fused into one wide dot.
    #   cols [0, AHp)          -> hyper_b1_Qbias (plain linear, no ReLU)
    #   cols [AHp, AHp+5*HH)   -> first layers of the five 2-layer MLPs
    pre = jnp.dot(s, w1cat_ref[...], preferred_element_type=jnp.float32) + b1cat_ref[...]
    b1q = pre[:, :AHp]                                   # (TN, AHp)
    hid1 = jnp.maximum(pre[:, AHp:AHp + HID1], 0.0)      # (TN, 5*HH) shared ReLU

    # Layer 2: block-diagonal fusion of the five second layers; output segments
    # are padded to 128-lane boundaries so every slice below is aligned.
    out2 = jnp.dot(hid1, w2cat_ref[...], preferred_element_type=jnp.float32) + b2cat_ref[...]
    c0 = 0
    w1 = jnp.abs(out2[:, c0:c0 + AHp]); c0 += AHp        # |hyper_w1|     (TN, AHp)
    w2 = jnp.abs(out2[:, c0:c0 + AHp]); c0 += AHp        # |hyper_w2|     (TN, AHp)
    w1q = out2[:, c0:c0 + AJHp]; c0 += AJHp              # hyper_w1_Qbias (TN, AJHp)
    w2q = out2[:, c0:c0 + AJp]; c0 += AJp                # hyper_w2_Qbias (TN, AJp)
    b2q = out2[:, c0:]                                   # hyper_b2_Qbias (TN, OUTp)

    # ---- mixing via constant selector matmuls (no per-agent loop) ----------
    # q @ Bcat broadcasts q into [ q_b1 | q_others (H-expanded) | q_others ]
    m1 = jnp.dot(qp, bcat_ref[...], preferred_element_type=jnp.float32)
    q_b1 = m1[:, :AHp]                                   # q[a] repeated over h
    q_bo = m1[:, AHp:AHp + AJHp]                         # q[others(a,j)] over h
    q_bos = m1[:, AHp + AJHp:]                           # q[others(a,j)]

    # sum_j q_others[a,j] * w1_Qbias[a,j,:] via a constant block-selector matmul
    oth = jnp.dot(q_bo * w1q, r1_ref[...], preferred_element_type=jnp.float32)
    hid = _elu(q_b1 * w1 + oth + b1q)                    # (TN, AHp)

    # final H-reduction and "others" bias reduction as selector matmuls; the
    # whole (TN, OUTp) tile is written with a single lane-dense store.
    out = (jnp.dot(hid * w2, r2_ref[...], preferred_element_type=jnp.float32)
           + jnp.dot(q_bos * w2q, r3_ref[...], preferred_element_type=jnp.float32)
           + b2q)
    out_ref[...] = out


# ----------------------------------------------------------------------------
# Parameters (matching the torch module's per-head linear layers)
# ----------------------------------------------------------------------------
def make_params(key, S, A, H, HH):
    keys = iter(jax.random.split(key, 16))

    def lin(fan_in, fan_out):
        k = next(keys)
        scale = (2.0 / (fan_in + fan_out)) ** 0.5          # xavier-ish, deterministic
        W = jax.random.normal(k, (fan_in, fan_out), jnp.float32) * scale
        b = jnp.zeros((1, fan_out), jnp.float32)           # constant_(x, 0)
        return (W, b)

    p = {}
    p["w1"] = lin(S, HH) + lin(HH, A * H)
    p["w2"] = lin(S, HH) + lin(HH, A * H)
    p["w1q"] = lin(S, HH) + lin(HH, A * (A - 1) * H)
    p["w2q"] = lin(S, HH) + lin(HH, A * (A - 1))
    p["b1q"] = lin(S, A * H)
    p["b2q"] = lin(S, HH) + lin(HH, A)
    return p


# ----------------------------------------------------------------------------
# Host-side fusion of weights + constant selector / reduction matrices
# ----------------------------------------------------------------------------
def _build_fused(params, *, S, A, H, HH):
    AH, AJ = A * H, A * (A - 1)
    AJH = AJ * H
    AHp = _round_up(AH, 128)
    AJHp = _round_up(AJH, 128)
    AJp = _round_up(AJ, 128)
    OUTp = 128
    Ap = _round_up(A, 8)

    def padc(x, w):
        return jnp.pad(x, ((0, 0), (0, w - x.shape[1])))

    w1_Wa, w1_ba, w1_Wb, w1_bb = params["w1"]
    w2_Wa, w2_ba, w2_Wb, w2_bb = params["w2"]
    w1q_Wa, w1q_ba, w1q_Wb, w1q_bb = params["w1q"]
    w2q_Wa, w2q_ba, w2q_Wb, w2q_bb = params["w2q"]
    b1q_W, b1q_b = params["b1q"]
    b2q_Wa, b2q_ba, b2q_Wb, b2q_bb = params["b2q"]

    # Fused layer-1: [ b1q(linear, padded to AHp) | w1 | w2 | w1q | w2q | b2q ] first layers.
    W1cat = jnp.concatenate(
        [padc(b1q_W, AHp), w1_Wa, w2_Wa, w1q_Wa, w2q_Wa, b2q_Wa], axis=1).astype(jnp.float32)
    b1cat = jnp.concatenate(
        [padc(b1q_b, AHp), w1_ba, w2_ba, w1q_ba, w2q_ba, b2q_ba], axis=1).astype(jnp.float32)

    # Fused layer-2 (block diagonal); output segments padded to 128-lane multiples.
    seg_cols = [AHp, AHp, AJHp, AJp, OUTp]
    col_off = [0]
    for c in seg_cols[:-1]:
        col_off.append(col_off[-1] + c)
    W2CAT = sum(seg_cols)
    W2cat = jnp.zeros((5 * HH, W2CAT), jnp.float32)
    b2cat = jnp.zeros((1, W2CAT), jnp.float32)
    layer2 = [(w1_Wb, w1_bb), (w2_Wb, w2_bb), (w1q_Wb, w1q_bb),
              (w2q_Wb, w2q_bb), (b2q_Wb, b2q_bb)]
    for k, ((Wb, bb), c0) in enumerate(zip(layer2, col_off)):
        W2cat = W2cat.at[k * HH:(k + 1) * HH, c0:c0 + Wb.shape[1]].set(Wb.astype(jnp.float32))
        b2cat = b2cat.at[:, c0:c0 + bb.shape[1]].set(bb.astype(jnp.float32))

    # Constant 0/1 selector / reduction matrices for the mixing step.
    B1 = jnp.zeros((Ap, AHp), jnp.float32)   # q[a]            -> slot (a, h)
    Bo = jnp.zeros((Ap, AJHp), jnp.float32)  # q[others(a,j)]  -> slot (a, j, h)
    Bos = jnp.zeros((Ap, AJp), jnp.float32)  # q[others(a,j)]  -> slot (a, j)
    R1 = jnp.zeros((AJHp, AHp), jnp.float32)  # sum over j:  (a, j, h) -> (a, h)
    R2 = jnp.zeros((AHp, OUTp), jnp.float32)  # sum over h:  (a, h)    -> a
    R3 = jnp.zeros((AJp, OUTp), jnp.float32)  # sum over j:  (a, j)    -> a
    eyeH = jnp.eye(H, dtype=jnp.float32)
    for a in range(A):
        B1 = B1.at[a, a * H:(a + 1) * H].set(1.0)
        R2 = R2.at[a * H:(a + 1) * H, a].set(1.0)
        for j in range(A - 1):
            src = j if j < a else j + 1      # "others" ordering of the torch code
            base = a * (A - 1) + j
            Bo = Bo.at[src, base * H:(base + 1) * H].set(1.0)
            Bos = Bos.at[src, base].set(1.0)
            R1 = R1.at[base * H:(base + 1) * H, a * H:(a + 1) * H].set(eyeH)
            R3 = R3.at[base, a].set(1.0)
    Bcat = jnp.concatenate([B1, Bo, Bos], axis=1)   # (Ap, AHp + AJHp + AJp)

    fused = (W1cat, b1cat, W2cat, b2cat, Bcat, R1, R2, R3)
    dims = dict(AHp=AHp, AJHp=AJHp, AJp=AJp, OUTp=OUTp, Ap=Ap, HID1=5 * HH)
    return fused, dims


# ----------------------------------------------------------------------------
# Wrapper
# ----------------------------------------------------------------------------
def q_global_pallas(agent_q_individual, states, params, *, A, H, HH, block_rows=512):
    T, B = agent_q_individual.shape[0], agent_q_individual.shape[1]
    N = T * B
    S = states.shape[-1]
    s = states.reshape(N, S).astype(jnp.float32)
    q = agent_q_individual.reshape(N, A).astype(jnp.float32)

    fused, d = _build_fused(params, S=S, A=A, H=H, HH=HH)
    AHp, AJHp, AJp = d["AHp"], d["AJHp"], d["AJp"]
    OUTp, Ap, HID1 = d["OUTp"], d["Ap"], d["HID1"]

    # Row tiling: TN multiple of 8; pad N to a multiple of TN (padded rows are
    # zeros and sliced away after the call).
    TN = min(block_rows, _round_up(N, 8))
    Npad = _round_up(N, TN)
    s = jnp.pad(s, ((0, Npad - N), (0, 0)))
    q = jnp.pad(q, ((0, Npad - N), (0, Ap - A)))

    def row_spec(width):
        return pl.BlockSpec((TN, width), lambda i: (i, 0))

    weight_specs = [pl.BlockSpec(w.shape, lambda i: (0, 0)) for w in fused]

    out = pl.pallas_call(
        functools.partial(q_global_kernel, AHp=AHp, AJHp=AJHp, AJp=AJp, HID1=HID1),
        out_shape=jax.ShapeDtypeStruct((Npad, OUTp), jnp.float32),
        grid=(Npad // TN,),
        in_specs=[row_spec(S), row_spec(Ap)] + weight_specs,
        out_specs=row_spec(OUTp),
        compiler_params=pltpu.CompilerParams(dimension_semantics=("parallel",)),
    )(s, q, *fused)
    return out[:N, :A].reshape(T, B, A)


# ----------------------------------------------------------------------------
# Pure-JAX reference (mirror of the torch forward) for verification
# ----------------------------------------------------------------------------
def q_global_reference(agent_q_individual, states, params, *, A, H):
    T, B = agent_q_individual.shape[0], agent_q_individual.shape[1]
    N = T * B
    s = states.reshape(N, -1).astype(jnp.float32)
    q = agent_q_individual.reshape(N, A).astype(jnp.float32)

    def mlp2(x, Wa, ba, Wb, bb):
        return jnp.maximum(x @ Wa + ba, 0.0) @ Wb + bb

    w1 = jnp.abs(mlp2(s, *params["w1"])).reshape(N, A, 1, H)
    w2 = jnp.abs(mlp2(s, *params["w2"])).reshape(N, A, H, 1)
    w1q = mlp2(s, *params["w1q"]).reshape(N, A, A - 1, H)
    w2q = mlp2(s, *params["w2q"]).reshape(N, A, A - 1, 1)
    b1q = (s @ params["b1q"][0] + params["b1q"][1]).reshape(N, A, 1, H)
    b2q = mlp2(s, *params["b2q"]).reshape(N, A, 1, 1)

    q_ind = q.reshape(N, A, 1, 1)
    q_oth = jnp.stack(
        [q[:, [j for j in range(A) if j != a]] for a in range(A)], axis=1
    ).reshape(N, A, 1, A - 1)

    hid = _elu(q_ind * w1 + jnp.matmul(q_oth, w1q) + b1q)        # (N, A, 1, H)
    out = jnp.matmul(hid, w2) + jnp.matmul(q_oth, w2q) + b2q     # (N, A, 1, 1)
    return out.reshape(T, B, A)


if __name__ == "__main__":
    # Small deterministic shapes: episode chunk T=2, batch B=4, num_agents A=3,
    # cent_obs_dim S=16, mixer_hidden_dim H=32, hypernet_hidden_dim HH=64.
    T, B, A, S, H, HH = 2, 4, 3, 16, 32, 64

    key = jax.random.PRNGKey(0)
    k_q, k_s, k_p = jax.random.split(key, 3)
    agent_q_individual = jax.random.normal(k_q, (T, B, A), jnp.float32)
    states = jax.random.normal(k_s, (T, B, S), jnp.float32)
    params = make_params(k_p, S, A, H, HH)

    out = q_global_pallas(agent_q_individual, states, params, A=A, H=H, HH=HH)
    out = jax.block_until_ready(out)

    ref = q_global_reference(agent_q_individual, states, params, A=A, H=H)
    assert out.shape == (T, B, A)
    assert jnp.all(jnp.isfinite(out)), "non-finite output"
    assert jnp.allclose(out, ref, atol=2e-2, rtol=2e-2), "mismatch vs reference"

    print("KERNEL_OK")
</pallas_src>

<mosaic_0001>
module attributes {stable_mosaic.version = 11 : i64} {
  func.func @q_global_kernel(%arg0: i32, %arg1: memref<8x16xf32, #tpu.memory_space<vmem>>, %arg2: memref<8x8xf32, #tpu.memory_space<vmem>>, %arg3: memref<16x448xf32, #tpu.memory_space<vmem>>, %arg4: memref<1x448xf32, #tpu.memory_space<vmem>>, %arg5: memref<320x768xf32, #tpu.memory_space<vmem>>, %arg6: memref<1x768xf32, #tpu.memory_space<vmem>>, %arg7: memref<8x512xf32, #tpu.memory_space<vmem>>, %arg8: memref<256x128xf32, #tpu.memory_space<vmem>>, %arg9: memref<128x128xf32, #tpu.memory_space<vmem>>, %arg10: memref<128x128xf32, #tpu.memory_space<vmem>>, %arg11: memref<8x128xf32, #tpu.memory_space<vmem>>) attributes {dimension_semantics = [#tpu.dimension_semantics<parallel>], iteration_bounds = array<i64: 1>, scalar_prefetch = 0 : i64, scratch_operands = 0 : i64, tpu.core_type = #tpu.core_type<tc>, window_params = [{transform_indices = @transform_0, window_bounds = array<i64: 8, 16>}, {transform_indices = @transform_1, window_bounds = array<i64: 8, 8>}, {pipeline_mode = #tpu.pipeline_mode<synchronous>, transform_indices = @transform_2, window_bounds = array<i64: 16, 448>}, {pipeline_mode = #tpu.pipeline_mode<synchronous>, transform_indices = @transform_3, window_bounds = array<i64: 1, 448>}, {pipeline_mode = #tpu.pipeline_mode<synchronous>, transform_indices = @transform_4, window_bounds = array<i64: 320, 768>}, {pipeline_mode = #tpu.pipeline_mode<synchronous>, transform_indices = @transform_5, window_bounds = array<i64: 1, 768>}, {pipeline_mode = #tpu.pipeline_mode<synchronous>, transform_indices = @transform_6, window_bounds = array<i64: 8, 512>}, {pipeline_mode = #tpu.pipeline_mode<synchronous>, transform_indices = @transform_7, window_bounds = array<i64: 256, 128>}, {pipeline_mode = #tpu.pipeline_mode<synchronous>, transform_indices = @transform_8, window_bounds = array<i64: 128, 128>}, {pipeline_mode = #tpu.pipeline_mode<synchronous>, transform_indices = @transform_9, window_bounds = array<i64: 128, 128>}, {transform_indices = @transform_10, window_bounds = array<i64: 8, 128>}]} {
    %c0 = arith.constant 0 : index
    %c0_0 = arith.constant 0 : index
    %0 = vector.load %arg1[%c0, %c0_0] : memref<8x16xf32, #tpu.memory_space<vmem>>, vector<8x16xf32>
    %c0_1 = arith.constant 0 : index
    %c0_2 = arith.constant 0 : index
    %1 = vector.load %arg2[%c0_1, %c0_2] : memref<8x8xf32, #tpu.memory_space<vmem>>, vector<8x8xf32>
    %c0_3 = arith.constant 0 : index
    %c0_4 = arith.constant 0 : index
    %2 = vector.load %arg3[%c0_3, %c0_4] : memref<16x448xf32, #tpu.memory_space<vmem>>, vector<16x448xf32>
    %cst = arith.constant dense<0.000000e+00> : vector<8x448xf32>
    %3 = tpu.matmul %0, %2, %cst {dimension_numbers = #tpu.dot_dimension_numbers<[1], [0], [0], [1], [0, 0, 1, 1], [], []>} : vector<8x16xf32>, vector<16x448xf32>, vector<8x448xf32> -> vector<8x448xf32>
    %c0_5 = arith.constant 0 : index
    %c0_6 = arith.constant 0 : index
    %4 = vector.load %arg4[%c0_5, %c0_6] : memref<1x448xf32, #tpu.memory_space<vmem>>, vector<1x448xf32>
    %5 = vector.broadcast %4 : vector<1x448xf32> to vector<8x448xf32>
    %6 = arith.addf %3, %5 : vector<8x448xf32>
    %7 = vector.extract_strided_slice %6 {offsets = [0, 0], sizes = [8, 128], strides = [1, 1]} : vector<8x448xf32> to vector<8x128xf32>
    %8 = vector.extract_strided_slice %6 {offsets = [0, 128], sizes = [8, 320], strides = [1, 1]} : vector<8x448xf32> to vector<8x320xf32>
    %cst_7 = arith.constant 0.000000e+00 : f32
    %9 = vector.broadcast %cst_7 : f32 to vector<8x320xf32>
    %10 = arith.maximumf %8, %9 : vector<8x320xf32>
    %c0_8 = arith.constant 0 : index
    %c0_9 = arith.constant 0 : index
    %11 = vector.load %arg5[%c0_8, %c0_9] : memref<320x768xf32, #tpu.memory_space<vmem>>, vector<320x768xf32>
    %cst_10 = arith.constant dense<0.000000e+00> : vector<8x768xf32>
    %12 = tpu.matmul %10, %11, %cst_10 {dimension_numbers = #tpu.dot_dimension_numbers<[1], [0], [0], [1], [0, 0, 1, 1], [], []>} : vector<8x320xf32>, vector<320x768xf32>, vector<8x768xf32> -> vector<8x768xf32>
    %c0_11 = arith.constant 0 : index
    %c0_12 = arith.constant 0 : index
    %13 = vector.load %arg6[%c0_11, %c0_12] : memref<1x768xf32, #tpu.memory_space<vmem>>, vector<1x768xf32>
    %14 = vector.broadcast %13 : vector<1x768xf32> to vector<8x768xf32>
    %15 = arith.addf %12, %14 : vector<8x768xf32>
    %16 = vector.extract_strided_slice %15 {offsets = [0, 0], sizes = [8, 128], strides = [1, 1]} : vector<8x768xf32> to vector<8x128xf32>
    %17 = math.absf %16 : vector<8x128xf32>
    %18 = vector.extract_strided_slice %15 {offsets = [0, 128], sizes = [8, 128], strides = [1, 1]} : vector<8x768xf32> to vector<8x128xf32>
    %19 = math.absf %18 : vector<8x128xf32>
    %20 = vector.extract_strided_slice %15 {offsets = [0, 256], sizes = [8, 256], strides = [1, 1]} : vector<8x768xf32> to vector<8x256xf32>
    %21 = vector.extract_strided_slice %15 {offsets = [0, 512], sizes = [8, 128], strides = [1, 1]} : vector<8x768xf32> to vector<8x128xf32>
    %22 = vector.extract_strided_slice %15 {offsets = [0, 640], sizes = [8, 128], strides = [1, 1]} : vector<8x768xf32> to vector<8x128xf32>
    %c0_13 = arith.constant 0 : index
    %c0_14 = arith.constant 0 : index
    %23 = vector.load %arg7[%c0_13, %c0_14] : memref<8x512xf32, #tpu.memory_space<vmem>>, vector<8x512xf32>
    %cst_15 = arith.constant dense<0.000000e+00> : vector<8x512xf32>
    %24 = tpu.matmul %1, %23, %cst_15 {dimension_numbers = #tpu.dot_dimension_numbers<[1], [0], [0], [1], [0, 0, 1, 1], [], []>} : vector<8x8xf32>, vector<8x512xf32>, vector<8x512xf32> -> vector<8x512xf32>
    %25 = vector.extract_strided_slice %24 {offsets = [0, 0], sizes = [8, 128], strides = [1, 1]} : vector<8x512xf32> to vector<8x128xf32>
    %26 = vector.extract_strided_slice %24 {offsets = [0, 128], sizes = [8, 256], strides = [1, 1]} : vector<8x512xf32> to vector<8x256xf32>
    %27 = vector.extract_strided_slice %24 {offsets = [0, 384], sizes = [8, 128], strides = [1, 1]} : vector<8x512xf32> to vector<8x128xf32>
    %28 = arith.mulf %26, %20 : vector<8x256xf32>
    %c0_16 = arith.constant 0 : index
    %c0_17 = arith.constant 0 : index
    %29 = vector.load %arg8[%c0_16, %c0_17] : memref<256x128xf32, #tpu.memory_space<vmem>>, vector<256x128xf32>
    %cst_18 = arith.constant dense<0.000000e+00> : vector<8x128xf32>
    %30 = tpu.matmul %28, %29, %cst_18 {dimension_numbers = #tpu.dot_dimension_numbers<[1], [0], [0], [1], [0, 0, 1, 1], [], []>} : vector<8x256xf32>, vector<256x128xf32>, vector<8x128xf32> -> vector<8x128xf32>
    %31 = arith.mulf %25, %17 : vector<8x128xf32>
    %32 = arith.addf %31, %30 : vector<8x128xf32>
    %33 = arith.addf %32, %7 : vector<8x128xf32>
    %cst_19 = arith.constant 0.000000e+00 : f32
    %34 = vector.broadcast %cst_19 : f32 to vector<8x128xf32>
    %35 = arith.cmpf ogt, %33, %34 : vector<8x128xf32>
    %36 = math.exp %33 : vector<8x128xf32>
    %cst_20 = arith.constant 1.000000e+00 : f32
    %37 = vector.broadcast %cst_20 : f32 to vector<8x128xf32>
    %38 = arith.subf %36, %37 : vector<8x128xf32>
    %39 = arith.select %35, %33, %38 : vector<8x128xi1>, vector<8x128xf32>
    %40 = arith.mulf %39, %19 : vector<8x128xf32>
    %c0_21 = arith.constant 0 : index
    %c0_22 = arith.constant 0 : index
    %41 = vector.load %arg9[%c0_21, %c0_22] : memref<128x128xf32, #tpu.memory_space<vmem>>, vector<128x128xf32>
    %cst_23 = arith.constant dense<0.000000e+00> : vector<8x128xf32>
    %42 = tpu.matmul %40, %41, %cst_23 {dimension_numbers = #tpu.dot_dimension_numbers<[1], [0], [0], [1], [0, 0, 1, 1], [], []>} : vector<8x128xf32>, vector<128x128xf32>, vector<8x128xf32> -> vector<8x128xf32>
    %43 = arith.mulf %27, %21 : vector<8x128xf32>
    %c0_24 = arith.constant 0 : index
    %c0_25 = arith.constant 0 : index
    %44 = vector.load %arg10[%c0_24, %c0_25] : memref<128x128xf32, #tpu.memory_space<vmem>>, vector<128x128xf32>
    %cst_26 = arith.constant dense<0.000000e+00> : vector<8x128xf32>
    %45 = tpu.matmul %43, %44, %cst_26 {dimension_numbers = #tpu.dot_dimension_numbers<[1], [0], [0], [1], [0, 0, 1, 1], [], []>} : vector<8x128xf32>, vector<128x128xf32>, vector<8x128xf32> -> vector<8x128xf32>
    %46 = arith.addf %42, %45 : vector<8x128xf32>
    %47 = arith.addf %46, %22 : vector<8x128xf32>
    %c0_27 = arith.constant 0 : index
    %c0_28 = arith.constant 0 : index
    %48 = vector.load %arg11[%c0_27, %c0_28] : memref<8x128xf32, #tpu.memory_space<vmem>>, vector<8x128xf32>
    tpu.vector_store %arg11[%c0_27, %c0_28], %47 {strides = array<i32>} : memref<8x128xf32, #tpu.memory_space<vmem>>, vector<8x128xf32>,
    return
  }
  func.func @transform_0(%arg0: i32) -> (i32, i32) {
    %c0_i32 = arith.constant 0 : i32
    %c0_i32_0 = arith.constant 0 : i32
    return %arg0, %c0_i32 : i32, i32
  }
  func.func @transform_1(%arg0: i32) -> (i32, i32) {
    %c0_i32 = arith.constant 0 : i32
    %c0_i32_0 = arith.constant 0 : i32
    return %arg0, %c0_i32 : i32, i32
  }
  func.func @transform_2(%arg0: i32) -> (i32, i32) {
    %c0_i32 = arith.constant 0 : i32
    %c0_i32_0 = arith.constant 0 : i32
    %c0_i32_1 = arith.constant 0 : i32
    return %c0_i32, %c0_i32_0 : i32, i32
  }
  func.func @transform_3(%arg0: i32) -> (i32, i32) {
    %c0_i32 = arith.constant 0 : i32
    %c0_i32_0 = arith.constant 0 : i32
    %c0_i32_1 = arith.constant 0 : i32
    return %c0_i32, %c0_i32_0 : i32, i32
  }
  func.func @transform_4(%arg0: i32) -> (i32, i32) {
    %c0_i32 = arith.constant 0 : i32
    %c0_i32_0 = arith.constant 0 : i32
    %c0_i32_1 = arith.constant 0 : i32
    return %c0_i32, %c0_i32_0 : i32, i32
  }
  func.func @transform_5(%arg0: i32) -> (i32, i32) {
    %c0_i32 = arith.constant 0 : i32
    %c0_i32_0 = arith.constant 0 : i32
    %c0_i32_1 = arith.constant 0 : i32
    return %c0_i32, %c0_i32_0 : i32, i32
  }
  func.func @transform_6(%arg0: i32) -> (i32, i32) {
    %c0_i32 = arith.constant 0 : i32
    %c0_i32_0 = arith.constant 0 : i32
    %c0_i32_1 = arith.constant 0 : i32
    return %c0_i32, %c0_i32_0 : i32, i32
  }
  func.func @transform_7(%arg0: i32) -> (i32, i32) {
    %c0_i32 = arith.constant 0 : i32
    %c0_i32_0 = arith.constant 0 : i32
    %c0_i32_1 = arith.constant 0 : i32
    return %c0_i32, %c0_i32_0 : i32, i32
  }
  func.func @transform_8(%arg0: i32) -> (i32, i32) {
    %c0_i32 = arith.constant 0 : i32
    %c0_i32_0 = arith.constant 0 : i32
    %c0_i32_1 = arith.constant 0 : i32
    return %c0_i32, %c0_i32_0 : i32, i32
  }
  func.func @transform_9(%arg0: i32) -> (i32, i32) {
    %c0_i32 = arith.constant 0 : i32
    %c0_i32_0 = arith.constant 0 : i32
    %c0_i32_1 = arith.constant 0 : i32
    return %c0_i32, %c0_i32_0 : i32, i32
  }
  func.func @transform_10(%arg0: i32) -> (i32, i32) {
    %c0_i32 = arith.constant 0 : i32
    %c0_i32_0 = arith.constant 0 : i32
    return %arg0, %c0_i32 : i32, i32
  }
}

</mosaic_0001>

<llo_original>
// kernel: tpu_custom_call.1
$region0: #{tpu_custom_call.1}
  #allocation0 [shape = 'u32[]', space=smem, size = 0x4, offset = 0x4, fixed_abs, tag = 'smem constant byte address 0x4 - core index']
  #allocation1 [shape = 'u32[72,128]{1,0:T(1,128)}', space=vmem, size = 0x9000, scoped, tag = 'internal scratch']
  %s0 = inlined_call_operand.hbm [shape: f32[8,16], index: 0, kind: input, shape index: {}]
  %s1 = inlined_call_operand.hbm [shape: f32[8,8], index: 1, kind: input, shape index: {}]
  %s2 = inlined_call_operand.hbm [shape: f32[16,448], index: 2, kind: input, shape index: {}]
  %s3 = inlined_call_operand.hbm [shape: f32[1,448], index: 3, kind: input, shape index: {}]
  %s4 = inlined_call_operand.hbm [shape: f32[320,768], index: 4, kind: input, shape index: {}]
  %s5 = inlined_call_operand.hbm [shape: f32[1,768], index: 5, kind: input, shape index: {}]
  %s6 = inlined_call_operand.hbm [shape: f32[8,512], index: 6, kind: input, shape index: {}]
  %s7 = inlined_call_operand.hbm [shape: f32[256,128], index: 7, kind: input, shape index: {}]
  %s8 = inlined_call_operand.hbm [shape: f32[128,128], index: 8, kind: input, shape index: {}]
  %s9 = inlined_call_operand.hbm [shape: f32[128,128], index: 9, kind: input, shape index: {}]
  %s10 = inlined_call_operand.hbm [shape: f32[8,128], index: 10, kind: output, shape index: {}]
  %s11 = sld [smem:[#allocation0]]
  $region90: #{tpu_custom_call.1} parent=0
    _
  %s13 = ssub.s32 1, %s11
  %s14 = scalar_select 0, %s13, %s11
  $region1: #{tpu_custom_call.1} parent=0
    #allocation2 [shape = 'u8[4096]{0}', space=vmem, size = 0x1000, scoped, tag = 'input window, operand 0, single buffered']
    #allocation3 [shape = 's32[1]{0}', space=sflag, size = 0x4, scoped, tag = 'scoped memory for tpu_custom_call.1']
    #allocation4 [shape = 's32[1]{0}', space=sflag, size = 0x4, scoped, tag = 'scoped memory for tpu_custom_call.1']
    #allocation5 [shape = 'u8[4096]{0}', space=vmem, size = 0x1000, scoped, tag = 'input window, operand 1, single buffered']
    #allocation6 [shape = 's32[1]{0}', space=sflag, size = 0x4, scoped, tag = 'scoped memory for tpu_custom_call.1']
    #allocation7 [shape = 'u8[32768]{0}', space=vmem, size = 0x8000, scoped, tag = 'input window, operand 2, single buffered']
    #allocation8 [shape = 'u8[2048]{0}', space=vmem, size = 0x800, scoped, tag = 'input window, operand 3, single buffered']
    #allocation9 [shape = 's32[1]{0}', space=sflag, size = 0x4, scoped, tag = 'scoped memory for tpu_custom_call.1']
    #allocation10 [shape = 'u8[983040]{0}', space=vmem, size = 0xf0000, scoped, tag = 'input window, operand 4, single buffered']
    #allocation11 [shape = 'u8[3072]{0}', space=vmem, size = 0xc00, scoped, tag = 'input window, operand 5, single buffered']
    #allocation12 [shape = 's32[1]{0}', space=sflag, size = 0x4, scoped, tag = 'scoped memory for tpu_custom_call.1']
    #allocation13 [shape = 'u8[16384]{0}', space=vmem, size = 0x4000, scoped, tag = 'input window, operand 6, single buffered']
    #allocation14 [shape = 'u8[131072]{0}', space=vmem, size = 0x20000, scoped, tag = 'input window, operand 7, single buffered']
    #allocation15 [shape = 's32[1]{0}', space=sflag, size = 0x4, scoped, tag = 'scoped memory for tpu_custom_call.1']
    #allocation16 [shape = 'u8[65536]{0}', space=vmem, size = 0x10000, scoped, tag = 'input window, operand 8, single buffered']
    #allocation17 [shape = 'u8[65536]{0}', space=vmem, size = 0x10000, scoped, tag = 'input window, operand 9, single buffered']
    #allocation18 [shape = 's32[1]{0}', space=sflag, size = 0x4, scoped, tag = 'scoped memory for tpu_custom_call.1']
    #allocation19 [shape = 'u8[4096]{0}', space=vmem, size = 0x1000, scoped, tag = 'output window, operand 0, single buffered']
    %15 = vsyncpa [#allocation3], 0
    %16 = vsyncpa [#allocation6], 0
    %17 = vsyncpa [#allocation9], 0
    %18 = vsyncpa [#allocation12], 0
    %19 = vsyncpa [#allocation15], 0
    %20 = vsyncpa [#allocation18], 0
    %21 = vsyncpa [#allocation4], 0
    // Predicated region
    $region2: #{tpu_custom_call.1} parent=1 // pred_check
      _
    $region3: #{tpu_custom_call.1} parent=1 // pred_check_branch
      %23 = sbr.rel (0) target = $region5
    $region4: #{tpu_custom_call.1} parent=1 // pred_region
      %25 = vsyncadd [#allocation3], 0
      %s27 = sshll.u32 %s0, 4
      %s28 = int_to_ptr.hbm [resolvable:$true] %s27
      %s29 = sshll.u32 [#allocation2], 4
      %s30 = int_to_ptr.vmem [resolvable:$true] %s29
      %32 = dma.hbm_to_vmem [thread:$0]  %s28, 128, %s30, [#allocation3]
    $region5: #{tpu_custom_call.1} parent=1 // pred_fallthru
      _
    // Predicated region
    $region6: #{tpu_custom_call.1} parent=1 // pred_check
      _
    $region7: #{tpu_custom_call.1} parent=1 // pred_check_branch
      %34 = sbr.rel (0) target = $region9
    $region8: #{tpu_custom_call.1} parent=1 // pred_region
      %36 = vsyncadd [#allocation6], 0
      %s38 = sshll.u32 %s1, 4
      %s39 = int_to_ptr.hbm [resolvable:$true] %s38
      %s40 = sshll.u32 [#allocation5], 4
      %s41 = int_to_ptr.vmem [resolvable:$true] %s40
      %43 = dma.hbm_to_vmem [thread:$0]  %s39, 128, %s41, [#allocation6]
    $region9: #{tpu_custom_call.1} parent=1 // pred_fallthru
      _
    // Predicated region
    $region10: #{tpu_custom_call.1} parent=1 // pred_check
      _
    $region11: #{tpu_custom_call.1} parent=1 // pred_check_branch
      %45 = sbr.rel (0) target = $region13
    $region12: #{tpu_custom_call.1} parent=1 // pred_region
      %47 = vsyncadd [#allocation6], 0
      %s48 = sshll.u32 %s2, 4
      %s49 = int_to_ptr.hbm [resolvable:$true] %s48
      %s50 = sshll.u32 [#allocation7], 4
      %s51 = int_to_ptr.vmem [resolvable:$true] %s50
      %56 = dma.hbm_to_vmem [thread:$0]  %s49, 1024, %s51, [#allocation6], 512, 512, 32
    $region13: #{tpu_custom_call.1} parent=1 // pred_fallthru
      _
    // Predicated region
    $region14: #{tpu_custom_call.1} parent=1 // pred_check
      _
    $region15: #{tpu_custom_call.1} parent=1 // pred_check_branch
      %58 = sbr.rel (0) target = $region17
    $region16: #{tpu_custom_call.1} parent=1 // pred_region
      %60 = vsyncadd [#allocation9], 0
      %s62 = sshll.u32 %s3, 4
      %s63 = int_to_ptr.hbm [resolvable:$true] %s62
      %s64 = sshll.u32 [#allocation8], 4
      %s65 = int_to_ptr.vmem [resolvable:$true] %s64
      %67 = dma.hbm_to_vmem [thread:$0]  %s63, 64, %s65, [#allocation9]
    $region17: #{tpu_custom_call.1} parent=1 // pred_fallthru
      _
    // Predicated region
    $region18: #{tpu_custom_call.1} parent=1 // pred_check
      _
    $region19: #{tpu_custom_call.1} parent=1 // pred_check_branch
      %69 = sbr.rel (0) target = $region21
    $region20: #{tpu_custom_call.1} parent=1 // pred_region
      %71 = vsyncadd [#allocation9], 0
      %s72 = sshll.u32 %s4, 4
      %s73 = int_to_ptr.hbm [resolvable:$true] %s72
      %s74 = sshll.u32 [#allocation10], 4
      %s75 = int_to_ptr.vmem [resolvable:$true] %s74
      %80 = dma.hbm_to_vmem [thread:$0]  %s73, 30720, %s75, [#allocation9], 768, 768, 48
    $region21: #{tpu_custom_call.1} parent=1 // pred_fallthru
      _
    // Predicated region
    $region22: #{tpu_custom_call.1} parent=1 // pred_check
      _
    $region23: #{tpu_custom_call.1} parent=1 // pred_check_branch
      %82 = sbr.rel (0) target = $region25
    $region24: #{tpu_custom_call.1} parent=1 // pred_region
      %84 = vsyncadd [#allocation12], 0
      %s86 = sshll.u32 %s5, 4
      %s87 = int_to_ptr.hbm [resolvable:$true] %s86
      %s88 = sshll.u32 [#allocation11], 4
      %s89 = int_to_ptr.vmem [resolvable:$true] %s88
      %91 = dma.hbm_to_vmem [thread:$0]  %s87, 96, %s89, [#allocation12]
    $region25: #{tpu_custom_call.1} parent=1 // pred_fallthru
      _
    // Predicated region
    $region26: #{tpu_custom_call.1} parent=1 // pred_check
      _
    $region27: #{tpu_custom_call.1} parent=1 // pred_check_branch
      %93 = sbr.rel (0) target = $region29
    $region28: #{tpu_custom_call.1} parent=1 // pred_region
      %95 = vsyncadd [#allocation12], 0
      %s97 = sshll.u32 %s6, 4
      %s98 = int_to_ptr.hbm [resolvable:$true] %s97
      %s99 = sshll.u32 [#allocation13], 4
      %s100 = int_to_ptr.vmem [resolvable:$true] %s99
      %102 = dma.hbm_to_vmem [thread:$0]  %s98, 512, %s100, [#allocation12]
    $region29: #{tpu_custom_call.1} parent=1 // pred_fallthru
      _
    // Predicated region
    $region30: #{tpu_custom_call.1} parent=1 // pred_check
      _
    $region31: #{tpu_custom_call.1} parent=1 // pred_check_branch
      %104 = sbr.rel (0) target = $region33
    $region32: #{tpu_custom_call.1} parent=1 // pred_region
      %106 = vsyncadd [#allocation15], 0
      %s107 = sshll.u32 %s7, 4
      %s108 = int_to_ptr.hbm [resolvable:$true] %s107
      %s109 = sshll.u32 [#allocation14], 4
      %s110 = int_to_ptr.vmem [resolvable:$true] %s109
      %115 = dma.hbm_to_vmem [thread:$0]  %s108, 4096, %s110, [#allocation15], 128, 128, 8
    $region33: #{tpu_custom_call.1} parent=1 // pred_fallthru
      _
    // Predicated region
    $region34: #{tpu_custom_call.1} parent=1 // pred_check
      _
    $region35: #{tpu_custom_call.1} parent=1 // pred_check_branch
      %117 = sbr.rel (0) target = $region37
    $region36: #{tpu_custom_call.1} parent=1 // pred_region
      %119 = vsyncadd [#allocation15], 0
      %s120 = sshll.u32 %s8, 4
      %s121 = int_to_ptr.hbm [resolvable:$true] %s120
      %s122 = sshll.u32 [#allocation16], 4
      %s123 = int_to_ptr.vmem [resolvable:$true] %s122
      %128 = dma.hbm_to_vmem [thread:$0]  %s121, 2048, %s123, [#allocation15], 128, 128, 8
    $region37: #{tpu_custom_call.1} parent=1 // pred_fallthru
      _
    // Predicated region
    $region38: #{tpu_custom_call.1} parent=1 // pred_check
      _
    $region39: #{tpu_custom_call.1} parent=1 // pred_check_branch
      %130 = sbr.rel (0) target = $region41
    $region40: #{tpu_custom_call.1} parent=1 // pred_region
      %132 = vsyncadd [#allocation18], 0
      %s133 = sshll.u32 %s9, 4
      %s134 = int_to_ptr.hbm [resolvable:$true] %s133
      %s135 = sshll.u32 [#allocation17], 4
      %s136 = int_to_ptr.vmem [resolvable:$true] %s135
      %141 = dma.hbm_to_vmem [thread:$0]  %s134, 2048, %s136, [#allocation18], 128, 128, 8
    $region41: #{tpu_custom_call.1} parent=1 // pred_fallthru
      _
    // Predicated region
    $region42: #{tpu_custom_call.1} parent=1 // pred_check
      _
    $region43: #{tpu_custom_call.1} parent=1 // pred_check_branch
      %143 = sbr.rel (0) target = $region45
    $region44: #{tpu_custom_call.1} parent=1 // pred_region
      %145 = dma.done [#allocation3], 128
    $region45: #{tpu_custom_call.1} parent=1 // pred_fallthru
      _
    // Predicated region
    $region46: #{tpu_custom_call.1} parent=1 // pred_check
      _
    $region47: #{tpu_custom_call.1} parent=1 // pred_check_branch
      %147 = sbr.rel (0) target = $region49
    $region48: #{tpu_custom_call.1} parent=1 // pred_region
      %149 = dma.done [#allocation6], 128
    $region49: #{tpu_custom_call.1} parent=1 // pred_fallthru
      _
    // Predicated region
    $region50: #{tpu_custom_call.1} parent=1 // pred_check
      _
    $region51: #{tpu_custom_call.1} parent=1 // pred_check_branch
      %151 = sbr.rel (0) target = $region53
    $region52: #{tpu_custom_call.1} parent=1 // pred_region
      %153 = dma.done [#allocation6], 1024
    $region53: #{tpu_custom_call.1} parent=1 // pred_fallthru
      _
    // Predicated region
    $region54: #{tpu_custom_call.1} parent=1 // pred_check
      _
    $region55: #{tpu_custom_call.1} parent=1 // pred_check_branch
      %155 = sbr.rel (0) target = $region57
    $region56: #{tpu_custom_call.1} parent=1 // pred_region
      %157 = dma.done [#allocation9], 64
    $region57: #{tpu_custom_call.1} parent=1 // pred_fallthru
      _
    // Predicated region
    $region58: #{tpu_custom_call.1} parent=1 // pred_check
      _
    $region59: #{tpu_custom_call.1} parent=1 // pred_check_branch
      %159 = sbr.rel (0) target = $region61
    $region60: #{tpu_custom_call.1} parent=1 // pred_region
      %161 = dma.done [#allocation9], 30720
    $region61: #{tpu_custom_call.1} parent=1 // pred_fallthru
      _
    // Predicated region
    $region62: #{tpu_custom_call.1} parent=1 // pred_check
      _
    $region63: #{tpu_custom_call.1} parent=1 // pred_check_branch
      %163 = sbr.rel (0) target = $region65
    $region64: #{tpu_custom_call.1} parent=1 // pred_region
      %165 = dma.done [#allocation12], 96
    $region65: #{tpu_custom_call.1} parent=1 // pred_fallthru
      _
    // Predicated region
    $region66: #{tpu_custom_call.1} parent=1 // pred_check
      _
    $region67: #{tpu_custom_call.1} parent=1 // pred_check_branch
      %167 = sbr.rel (0) target = $region69
    $region68: #{tpu_custom_call.1} parent=1 // pred_region
      %169 = dma.done [#allocation12], 512
    $region69: #{tpu_custom_call.1} parent=1 // pred_fallthru
      _
    // Predicated region
    $region70: #{tpu_custom_call.1} parent=1 // pred_check
      _
    $region71: #{tpu_custom_call.1} parent=1 // pred_check_branch
      %171 = sbr.rel (0) target = $region73
    $region72: #{tpu_custom_call.1} parent=1 // pred_region
      %173 = dma.done [#allocation15], 4096
    $region73: #{tpu_custom_call.1} parent=1 // pred_fallthru
      _
    // Predicated region
    $region74: #{tpu_custom_call.1} parent=1 // pred_check
      _
    $region75: #{tpu_custom_call.1} parent=1 // pred_check_branch
      %175 = sbr.rel (0) target = $region77
    $region76: #{tpu_custom_call.1} parent=1 // pred_region
      %177 = dma.done [#allocation15], 2048
    $region77: #{tpu_custom_call.1} parent=1 // pred_fallthru
      _
    // Predicated region
    $region78: #{tpu_custom_call.1} parent=1 // pred_check
      _
    $region79: #{tpu_custom_call.1} parent=1 // pred_check_branch
      %179 = sbr.rel (0) target = $region81
    $region80: #{tpu_custom_call.1} parent=1 // pred_region
      %181 = dma.done [#allocation18], 2048
    $region81: #{tpu_custom_call.1} parent=1 // pred_fallthru
      _
    %v182 = vld [vmem:[#allocation2] sm:$0xff]
    %v183 = vld [vmem:[#allocation5] sm:$0xff]
    %v184 = vld [vmem:[#allocation7] sm:$0xff]
    %v185 = vld [vmem:[#allocation7 + $0x8] sm:$0xff]
    %v186 = vld [vmem:[#allocation7 + $0x10] sm:$0xff]
    %v187 = vld [vmem:[#allocation7 + $0x18] sm:$0xff]
    %v188 = vld [vmem:[#allocation7 + $0x20] sm:$0xff]
    %v189 = vld [vmem:[#allocation7 + $0x28] sm:$0xff]
    %v190 = vld [vmem:[#allocation7 + $0x30] sm:$0xff]
    %v191 = vld [vmem:[#allocation7 + $0x38] sm:$0xff]
    %v192 = vld [vmem:[#allocation8] sm:$0xf]
    %v194 = vperm.slane %v192, 0
    %v195 = vperm.slane %v192, 1
    %v196 = vperm.slane %v192, 2
    %v197 = vperm.slane %v192, 3
    %vm202 = vcmask 130048
    %v204 = vsel %vm202, %v182, 0
    %206 = vmatpush.msra.mxu0 0.0
    %207 = vmatpush.msra.mxu0 0.0
    %208 = vmatpush.msra.mxu0 0.0
    %209 = vmatpush.msra.mxu0 0.0
    %210 = vmatpush.msra.mxu0 0.0
    %211 = vmatpush.msra.mxu0 0.0
    %212 = vmatpush.msra.mxu0 0.0
    %213 = vmatpush.msra.mxu0 0.0
    %214 = vmatpush.msra.mxu0 0.0
    %215 = vmatpush.msra.mxu0 0.0
    %216 = vmatpush.msra.mxu0 0.0
    %217 = vmatpush.msra.mxu0 0.0
    %218 = vmatpush.msra.mxu0 0.0
    %219 = vmatpush.msra.mxu0 0.0
    %220 = vmatpush.msra.mxu0 %v188
    %221 = vmatpush.msra.mxu0 %v184
    %222 = vmatmul.f32.gmra.mxu0 %v204
    %v223 = vpop.f32.mrf.mxu0
    %v224 = vadd.f32 %v194, %v223
    %225 = vdwg.mxu0
    %226 = vmatpush.msra.mxu0 0.0
    %227 = vmatpush.msra.mxu0 0.0
    %228 = vmatpush.msra.mxu0 0.0
    %229 = vmatpush.msra.mxu0 0.0
    %230 = vmatpush.msra.mxu0 0.0
    %231 = vmatpush.msra.mxu0 0.0
    %232 = vmatpush.msra.mxu0 0.0
    %233 = vmatpush.msra.mxu0 0.0
    %234 = vmatpush.msra.mxu0 0.0
    %235 = vmatpush.msra.mxu0 0.0
    %236 = vmatpush.msra.mxu0 0.0
    %237 = vmatpush.msra.mxu0 0.0
    %238 = vmatpush.msra.mxu0 0.0
    %239 = vmatpush.msra.mxu0 0.0
    %240 = vmatpush.msra.mxu0 %v189
    %241 = vmatpush.msra.mxu0 %v185
    %242 = vmatmul.f32.gmra.mxu0 %v204
    %v243 = vpop.f32.mrf.mxu0
    %v244 = vadd.f32 %v195, %v243
    %245 = vdwg.mxu0
    %246 = vmatpush.msra.mxu0 0.0
    %247 = vmatpush.msra.mxu0 0.0
    %248 = vmatpush.msra.mxu0 0.0
    %249 = vmatpush.msra.mxu0 0.0
    %250 = vmatpush.msra.mxu0 0.0
    %251 = vmatpush.msra.mxu0 0.0
    %252 = vmatpush.msra.mxu0 0.0
    %253 = vmatpush.msra.mxu0 0.0
    %254 = vmatpush.msra.mxu0 0.0
    %255 = vmatpush.msra.mxu0 0.0
    %256 = vmatpush.msra.mxu0 0.0
    %257 = vmatpush.msra.mxu0 0.0
    %258 = vmatpush.msra.mxu0 0.0
    %259 = vmatpush.msra.mxu0 0.0
    %260 = vmatpush.msra.mxu0 %v190
    %261 = vmatpush.msra.mxu0 %v186
    %262 = vmatmul.f32.gmra.mxu0 %v204
    %v263 = vpop.f32.mrf.mxu0
    %v264 = vadd.f32 %v196, %v263
    %265 = vdwg.mxu0
    %266 = vmatpush.msra.mxu0 0.0
    %267 = vmatpush.msra.mxu0 0.0
    %268 = vmatpush.msra.mxu0 0.0
    %269 = vmatpush.msra.mxu0 0.0
    %270 = vmatpush.msra.mxu0 0.0
    %271 = vmatpush.msra.mxu0 0.0
    %272 = vmatpush.msra.mxu0 0.0
    %273 = vmatpush.msra.mxu0 0.0
    %274 = vmatpush.msra.mxu0 0.0
    %275 = vmatpush.msra.mxu0 0.0
    %276 = vmatpush.msra.mxu0 0.0
    %277 = vmatpush.msra.mxu0 0.0
    %278 = vmatpush.msra.mxu0 0.0
    %279 = vmatpush.msra.mxu0 0.0
    %280 = vmatpush.msra.mxu0 %v191
    %281 = vmatpush.msra.mxu0 %v187
    %282 = vmatmul.f32.gmra.mxu0 %v204
    %v283 = vpop.f32.mrf.mxu0
    %v284 = vadd.f32 %v197, %v283
    %285 = vdwg.mxu0
    %v286 = vmax.f32 %v244, 0.0
    %v287 = vmax.f32 %v264, 0.0
    %v288 = vmax.f32 %v284, 0.0
    %v289 = vld [vmem:[#allocation10] sm:$0xff]
    %v290 = vld [vmem:[#allocation10 + $0x8] sm:$0xff]
    %v291 = vld [vmem:[#allocation10 + $0x10] sm:$0xff]
    %v292 = vld [vmem:[#allocation10 + $0x18] sm:$0xff]
    %v293 = vld [vmem:[#allocation10 + $0x20] sm:$0xff]
    %v294 = vld [vmem:[#allocation10 + $0x28] sm:$0xff]
    %v295 = vld [vmem:[#allocation10 + $0x30] sm:$0xff]
    %v296 = vld [vmem:[#allocation10 + $0x38] sm:$0xff]
    %v297 = vld [vmem:[#allocation10 + $0x40] sm:$0xff]
    %v298 = vld [vmem:[#allocation10 + $0x48] sm:$0xff]
    %v299 = vld [vmem:[#allocation10 + $0x50] sm:$0xff]
    %v300 = vld [vmem:[#allocation10 + $0x58] sm:$0xff]
    %v301 = vld [vmem:[#allocation10 + $0x60] sm:$0xff]
    %v302 = vld [vmem:[#allocation10 + $0x68] sm:$0xff]
    %v303 = vld [vmem:[#allocation10 + $0x70] sm:$0xff]
    %v304 = vld [vmem:[#allocation10 + $0x78] sm:$0xff]
    %v305 = vld [vmem:[#allocation10 + $0x80] sm:$0xff]
    %v306 = vld [vmem:[#allocation10 + $0x88] sm:$0xff]
    %v307 = vld [vmem:[#allocation10 + $0x90] sm:$0xff]
    %v308 = vld [vmem:[#allocation10 + $0x98] sm:$0xff]
    %v309 = vld [vmem:[#allocation10 + $0xa0] sm:$0xff]
    %v310 = vld [vmem:[#allocation10 + $0xa8] sm:$0xff]
    %v311 = vld [vmem:[#allocation10 + $0xb0] sm:$0xff]
    %v312 = vld [vmem:[#allocation10 + $0xb8] sm:$0xff]
    %v313 = vld [vmem:[#allocation10 + $0xc0] sm:$0xff]
    %v314 = vld [vmem:[#allocation10 + $0xc8] sm:$0xff]
    %v315 = vld [vmem:[#allocation10 + $0xd0] sm:$0xff]
    %v316 = vld [vmem:[#allocation10 + $0xd8] sm:$0xff]
    %v317 = vld [vmem:[#allocation10 + $0xe0] sm:$0xff]
    %v318 = vld [vmem:[#allocation10 + $0xe8] sm:$0xff]
    %v319 = vld [vmem:[#allocation10 + $0xf0] sm:$0xff]
    %v320 = vld [vmem:[#allocation10 + $0xf8] sm:$0xff]
    %v321 = vld [vmem:[#allocation10 + $0x100] sm:$0xff]
    %v322 = vld [vmem:[#allocation10 + $0x108] sm:$0xff]
    %v323 = vld [vmem:[#allocation10 + $0x110] sm:$0xff]
    %v324 = vld [vmem:[#allocation10 + $0x118] sm:$0xff]
    %v325 = vld [vmem:[#allocation10 + $0x120] sm:$0xff]
    %v326 = vld [vmem:[#allocation10 + $0x128] sm:$0xff]
    %v327 = vld [vmem:[#allocation10 + $0x130] sm:$0xff]
    %v328 = vld [vmem:[#allocation10 + $0x138] sm:$0xff]
    %v329 = vld [vmem:[#allocation10 + $0x140] sm:$0xff]
    %v330 = vld [vmem:[#allocation10 + $0x148] sm:$0xff]
    %v331 = vld [vmem:[#allocation10 + $0x150] sm:$0xff]
    %v332 = vld [vmem:[#allocation10 + $0x158] sm:$0xff]
    %v333 = vld [vmem:[#allocation10 + $0x160] sm:$0xff]
    %v334 = vld [vmem:[#allocation10 + $0x168] sm:$0xff]
    %v335 = vld [vmem:[#allocation10 + $0x170] sm:$0xff]
    %v336 = vld [vmem:[#allocation10 + $0x178] sm:$0xff]
    %v337 = vld [vmem:[#allocation10 + $0x180] sm:$0xff]
    %v338 = vld [vmem:[#allocation10 + $0x188] sm:$0xff]
    %v339 = vld [vmem:[#allocation10 + $0x190] sm:$0xff]
    %v340 = vld [vmem:[#allocation10 + $0x198] sm:$0xff]
    %v341 = vld [vmem:[#allocation10 + $0x1a0] sm:$0xff]
    %v342 = vld [vmem:[#allocation10 + $0x1a8] sm:$0xff]
    %v343 = vld [vmem:[#allocation10 + $0x1b0] sm:$0xff]
    %v344 = vld [vmem:[#allocation10 + $0x1b8] sm:$0xff]
    %v345 = vld [vmem:[#allocation10 + $0x1c0] sm:$0xff]
    %v346 = vld [vmem:[#allocation10 + $0x1c8] sm:$0xff]
    %v347 = vld [vmem:[#allocation10 + $0x1d0] sm:$0xff]
    %v348 = vld [vmem:[#allocation10 + $0x1d8] sm:$0xff]
    %v349 = vld [vmem:[#allocation10 + $0x1e0] sm:$0xff]
    %v350 = vld [vmem:[#allocation10 + $0x1e8] sm:$0xff]
    %v351 = vld [vmem:[#allocation10 + $0x1f0] sm:$0xff]
    %v352 = vld [vmem:[#allocation10 + $0x1f8] sm:$0xff]
    %v353 = vld [vmem:[#allocation10 + $0x200] sm:$0xff]
    %v354 = vld [vmem:[#allocation10 + $0x208] sm:$0xff]
    %v355 = vld [vmem:[#allocation10 + $0x210] sm:$0xff]
    %v356 = vld [vmem:[#allocation10 + $0x218] sm:$0xff]
    %v357 = vld [vmem:[#allocation10 + $0x220] sm:$0xff]
    %v358 = vld [vmem:[#allocation10 + $0x228] sm:$0xff]
    %v359 = vld [vmem:[#allocation10 + $0x230] sm:$0xff]
    %v360 = vld [vmem:[#allocation10 + $0x238] sm:$0xff]
    %v361 = vld [vmem:[#allocation10 + $0x240] sm:$0xff]
    %v362 = vld [vmem:[#allocation10 + $0x248] sm:$0xff]
    %v363 = vld [vmem:[#allocation10 + $0x250] sm:$0xff]
    %v364 = vld [vmem:[#allocation10 + $0x258] sm:$0xff]
    %v365 = vld [vmem:[#allocation10 + $0x260] sm:$0xff]
    %v366 = vld [vmem:[#allocation10 + $0x268] sm:$0xff]
    %v367 = vld [vmem:[#allocation10 + $0x270] sm:$0xff]
    %v368 = vld [vmem:[#allocation10 + $0x278] sm:$0xff]
    %v369 = vld [vmem:[#allocation10 + $0x280] sm:$0xff]
    %v370 = vld [vmem:[#allocation10 + $0x288] sm:$0xff]
    %v371 = vld [vmem:[#allocation10 + $0x290] sm:$0xff]
    %v372 = vld [vmem:[#allocation10 + $0x298] sm:$0xff]
    %v373 = vld [vmem:[#allocation10 + $0x2a0] sm:$0xff]
    %v374 = vld [vmem:[#allocation10 + $0x2a8] sm:$0xff]
    %v375 = vld [vmem:[#allocation10 + $0x2b0] sm:$0xff]
    %v376 = vld [vmem:[#allocation10 + $0x2b8] sm:$0xff]
    %v377 = vld [vmem:[#allocation10 + $0x2c0] sm:$0xff]
    %v378 = vld [vmem:[#allocation10 + $0x2c8] sm:$0xff]
    %v379 = vld [vmem:[#allocation10 + $0x2d0] sm:$0xff]
    %v380 = vld [vmem:[#allocation10 + $0x2d8] sm:$0xff]
    %v381 = vld [vmem:[#allocation10 + $0x2e0] sm:$0xff]
    %v382 = vld [vmem:[#allocation10 + $0x2e8] sm:$0xff]
    %v383 = vld [vmem:[#allocation10 + $0x2f0] sm:$0xff]
    %v384 = vld [vmem:[#allocation10 + $0x2f8] sm:$0xff]
    %v385 = vld [vmem:[#allocation10 + $0x300] sm:$0xff]
    %v386 = vld [vmem:[#allocation10 + $0x308] sm:$0xff]
    %v387 = vld [vmem:[#allocation10 + $0x310] sm:$0xff]
    %v388 = vld [vmem:[#allocation10 + $0x318] sm:$0xff]
    %v389 = vld [vmem:[#allocation10 + $0x320] sm:$0xff]
    %v390 = vld [vmem:[#allocation10 + $0x328] sm:$0xff]
    %v391 = vld [vmem:[#allocation10 + $0x330] sm:$0xff]
    %v392 = vld [vmem:[#allocation10 + $0x338] sm:$0xff]
    %v393 = vld [vmem:[#allocation10 + $0x340] sm:$0xff]
    %v394 = vld [vmem:[#allocation10 + $0x348] sm:$0xff]
    %v395 = vld [vmem:[#allocation10 + $0x350] sm:$0xff]
    %v396 = vld [vmem:[#allocation10 + $0x358] sm:$0xff]
    %v397 = vld [vmem:[#allocation10 + $0x360] sm:$0xff]
    %v398 = vld [vmem:[#allocation10 + $0x368] sm:$0xff]
    %v399 = vld [vmem:[#allocation10 + $0x370] sm:$0xff]
    %v400 = vld [vmem:[#allocation10 + $0x378] sm:$0xff]
    %v401 = vld [vmem:[#allocation10 + $0x380] sm:$0xff]
    %v402 = vld [vmem:[#allocation10 + $0x388] sm:$0xff]
    %v403 = vld [vmem:[#allocation10 + $0x390] sm:$0xff]
    %v404 = vld [vmem:[#allocation10 + $0x398] sm:$0xff]
    %v405 = vld [vmem:[#allocation10 + $0x3a0] sm:$0xff]
    %v406 = vld [vmem:[#allocation10 + $0x3a8] sm:$0xff]
    %v407 = vld [vmem:[#allocation10 + $0x3b0] sm:$0xff]
    %v408 = vld [vmem:[#allocation10 + $0x3b8] sm:$0xff]
    %v409 = vld [vmem:[#allocation10 + $0x3c0] sm:$0xff]
    %v410 = vld [vmem:[#allocation10 + $0x3c8] sm:$0xff]
    %v411 = vld [vmem:[#allocation10 + $0x3d0] sm:$0xff]
    %v412 = vld [vmem:[#allocation10 + $0x3d8] sm:$0xff]
    %v413 = vld [vmem:[#allocation10 + $0x3e0] sm:$0xff]
    %v414 = vld [vmem:[#allocation10 + $0x3e8] sm:$0xff]
    %v415 = vld [vmem:[#allocation10 + $0x3f0] sm:$0xff]
    %v416 = vld [vmem:[#allocation10 + $0x3f8] sm:$0xff]
    %v417 = vld [vmem:[#allocation10 + $0x400] sm:$0xff]
    %v418 = vld [vmem:[#allocation10 + $0x408] sm:$0xff]
    %v419 = vld [vmem:[#allocation10 + $0x410] sm:$0xff]
    %v420 = vld [vmem:[#allocation10 + $0x418] sm:$0xff]
    %v421 = vld [vmem:[#allocation10 + $0x420] sm:$0xff]
    %v422 = vld [vmem:[#allocation10 + $0x428] sm:$0xff]
    %v423 = vld [vmem:[#allocation10 + $0x430] sm:$0xff]
    %v424 = vld [vmem:[#allocation10 + $0x438] sm:$0xff]
    %v425 = vld [vmem:[#allocation10 + $0x440] sm:$0xff]
    %v426 = vld [vmem:[#allocation10 + $0x448] sm:$0xff]
    %v427 = vld [vmem:[#allocation10 + $0x450] sm:$0xff]
    %v428 = vld [vmem:[#allocation10 + $0x458] sm:$0xff]
    %v429 = vld [vmem:[#allocation10 + $0x460] sm:$0xff]
    %v430 = vld [vmem:[#allocation10 + $0x468] sm:$0xff]
    %v431 = vld [vmem:[#allocation10 + $0x470] sm:$0xff]
    %v432 = vld [vmem:[#allocation10 + $0x478] sm:$0xff]
    %v433 = vld [vmem:[#allocation10 + $0x480] sm:$0xff]
    %v434 = vld [vmem:[#allocation10 + $0x488] sm:$0xff]
    %v435 = vld [vmem:[#allocation10 + $0x490] sm:$0xff]
    %v436 = vld [vmem:[#allocation10 + $0x498] sm:$0xff]
    %v437 = vld [vmem:[#allocation10 + $0x4a0] sm:$0xff]
    %v438 = vld [vmem:[#allocation10 + $0x4a8] sm:$0xff]
    %v439 = vld [vmem:[#allocation10 + $0x4b0] sm:$0xff]
    %v440 = vld [vmem:[#allocation10 + $0x4b8] sm:$0xff]
    %v441 = vld [vmem:[#allocation10 + $0x4c0] sm:$0xff]
    %v442 = vld [vmem:[#allocation10 + $0x4c8] sm:$0xff]
    %v443 = vld [vmem:[#allocation10 + $0x4d0] sm:$0xff]
    %v444 = vld [vmem:[#allocation10 + $0x4d8] sm:$0xff]
    %v445 = vld [vmem:[#allocation10 + $0x4e0] sm:$0xff]
    %v446 = vld [vmem:[#allocation10 + $0x4e8] sm:$0xff]
    %v447 = vld [vmem:[#allocation10 + $0x4f0] sm:$0xff]
    %v448 = vld [vmem:[#allocation10 + $0x4f8] sm:$0xff]
    %v449 = vld [vmem:[#allocation10 + $0x500] sm:$0xff]
    %v450 = vld [vmem:[#allocation10 + $0x508] sm:$0xff]
    %v451 = vld [vmem:[#allocation10 + $0x510] sm:$0xff]
    %v452 = vld [vmem:[#allocation10 + $0x518] sm:$0xff]
    %v453 = vld [vmem:[#allocation10 + $0x520] sm:$0xff]
    %v454 = vld [vmem:[#allocation10 + $0x528] sm:$0xff]
    %v455 = vld [vmem:[#allocation10 + $0x530] sm:$0xff]
    %v456 = vld [vmem:[#allocation10 + $0x538] sm:$0xff]
    %v457 = vld [vmem:[#allocation10 + $0x540] sm:$0xff]
    %v458 = vld [vmem:[#allocation10 + $0x548] sm:$0xff]
    %v459 = vld [vmem:[#allocation10 + $0x550] sm:$0xff]
    %v460 = vld [vmem:[#allocation10 + $0x558] sm:$0xff]
    %v461 = vld [vmem:[#allocation10 + $0x560] sm:$0xff]
    %v462 = vld [vmem:[#allocation10 + $0x568] sm:$0xff]
    %v463 = vld [vmem:[#allocation10 + $0x570] sm:$0xff]
    %v464 = vld [vmem:[#allocation10 + $0x578] sm:$0xff]
    %v465 = vld [vmem:[#allocation10 + $0x580] sm:$0xff]
    %v466 = vld [vmem:[#allocation10 + $0x588] sm:$0xff]
    %v467 = vld [vmem:[#allocation10 + $0x590] sm:$0xff]
    %v468 = vld [vmem:[#allocation10 + $0x598] sm:$0xff]
    %v469 = vld [vmem:[#allocation10 + $0x5a0] sm:$0xff]
    %v470 = vld [vmem:[#allocation10 + $0x5a8] sm:$0xff]
    %v471 = vld [vmem:[#allocation10 + $0x5b0] sm:$0xff]
    %v472 = vld [vmem:[#allocation10 + $0x5b8] sm:$0xff]
    %v473 = vld [vmem:[#allocation10 + $0x5c0] sm:$0xff]
    %v474 = vld [vmem:[#allocation10 + $0x5c8] sm:$0xff]
    %v475 = vld [vmem:[#allocation10 + $0x5d0] sm:$0xff]
    %v476 = vld [vmem:[#allocation10 + $0x5d8] sm:$0xff]
    %v477 = vld [vmem:[#allocation10 + $0x5e0] sm:$0xff]
    %v478 = vld [vmem:[#allocation10 + $0x5e8] sm:$0xff]
    %v479 = vld [vmem:[#allocation10 + $0x5f0] sm:$0xff]
    %v480 = vld [vmem:[#allocation10 + $0x5f8] sm:$0xff]
    %v481 = vld [vmem:[#allocation10 + $0x600] sm:$0xff]
    %v482 = vld [vmem:[#allocation10 + $0x608] sm:$0xff]
    %v483 = vld [vmem:[#allocation10 + $0x610] sm:$0xff]
    %v484 = vld [vmem:[#allocation10 + $0x618] sm:$0xff]
    %v485 = vld [vmem:[#allocation10 + $0x620] sm:$0xff]
    %v486 = vld [vmem:[#allocation10 + $0x628] sm:$0xff]
    %v487 = vld [vmem:[#allocation10 + $0x630] sm:$0xff]
    %v488 = vld [vmem:[#allocation10 + $0x638] sm:$0xff]
    %v489 = vld [vmem:[#allocation10 + $0x640] sm:$0xff]
    %v490 = vld [vmem:[#allocation10 + $0x648] sm:$0xff]
    %v491 = vld [vmem:[#allocation10 + $0x650] sm:$0xff]
    %v492 = vld [vmem:[#allocation10 + $0x658] sm:$0xff]
    %v493 = vld [vmem:[#allocation10 + $0x660] sm:$0xff]
    %v494 = vld [vmem:[#allocation10 + $0x668] sm:$0xff]
    %v495 = vld [vmem:[#allocation10 + $0x670] sm:$0xff]
    %v496 = vld [vmem:[#allocation10 + $0x678] sm:$0xff]
    %v497 = vld [vmem:[#allocation10 + $0x680] sm:$0xff]
    %v498 = vld [vmem:[#allocation10 + $0x688] sm:$0xff]
    %v499 = vld [vmem:[#allocation10 + $0x690] sm:$0xff]
    %v500 = vld [vmem:[#allocation10 + $0x698] sm:$0xff]
    %v501 = vld [vmem:[#allocation10 + $0x6a0] sm:$0xff]
    %v502 = vld [vmem:[#allocation10 + $0x6a8] sm:$0xff]
    %v503 = vld [vmem:[#allocation10 + $0x6b0] sm:$0xff]
    %v504 = vld [vmem:[#allocation10 + $0x6b8] sm:$0xff]
    %v505 = vld [vmem:[#allocation10 + $0x6c0] sm:$0xff]
    %v506 = vld [vmem:[#allocation10 + $0x6c8] sm:$0xff]
    %v507 = vld [vmem:[#allocation10 + $0x6d0] sm:$0xff]
    %v508 = vld [vmem:[#allocation10 + $0x6d8] sm:$0xff]
    %v509 = vld [vmem:[#allocation10 + $0x6e0] sm:$0xff]
    %v510 = vld [vmem:[#allocation10 + $0x6e8] sm:$0xff]
    %v511 = vld [vmem:[#allocation10 + $0x6f0] sm:$0xff]
    %v512 = vld [vmem:[#allocation10 + $0x6f8] sm:$0xff]
    %v513 = vld [vmem:[#allocation10 + $0x700] sm:$0xff]
    %v514 = vld [vmem:[#allocation10 + $0x708] sm:$0xff]
    %v515 = vld [vmem:[#allocation10 + $0x710] sm:$0xff]
    %v516 = vld [vmem:[#allocation10 + $0x718] sm:$0xff]
    %v517 = vld [vmem:[#allocation10 + $0x720] sm:$0xff]
    %v518 = vld [vmem:[#allocation10 + $0x728] sm:$0xff]
    %v519 = vld [vmem:[#allocation10 + $0x730] sm:$0xff]
    %v520 = vld [vmem:[#allocation10 + $0x738] sm:$0xff]
    %v521 = vld [vmem:[#allocation10 + $0x740] sm:$0xff]
    %v522 = vld [vmem:[#allocation10 + $0x748] sm:$0xff]
    %v523 = vld [vmem:[#allocation10 + $0x750] sm:$0xff]
    %v524 = vld [vmem:[#allocation10 + $0x758] sm:$0xff]
    %v525 = vld [vmem:[#allocation10 + $0x760] sm:$0xff]
    %v526 = vld [vmem:[#allocation10 + $0x768] sm:$0xff]
    %v527 = vld [vmem:[#allocation10 + $0x770] sm:$0xff]
    %v528 = vld [vmem:[#allocation10 + $0x778] sm:$0xff]
    %v529 = vld [vmem:[#allocation11] sm:$0x3f]
    %v531 = vperm.slane %v529, 0
    %v532 = vperm.slane %v529, 1
    %v533 = vperm.slane %v529, 2
    %v534 = vperm.slane %v529, 3
    %v535 = vperm.slane %v529, 4
    %v536 = vperm.slane %v529, 5
    %vm543 = vcmask 523264
    %v545 = vsel %vm543, %v288, 0
    %547 = vmatpush.msra.mxu0 %v379
    %548 = vmatpush.msra.mxu0 %v373
    %549 = vmatpush.msra.mxu0 %v367
    %550 = vmatpush.msra.mxu0 %v361
    %551 = vmatpush.msra.mxu0 %v355
    %552 = vmatpush.msra.mxu0 %v349
    %553 = vmatpush.msra.mxu0 %v343
    %554 = vmatpush.msra.mxu0 %v337
    %555 = vmatpush.msra.mxu0 %v331
    %556 = vmatpush.msra.mxu0 %v325
    %557 = vmatpush.msra.mxu0 %v319
    %558 = vmatpush.msra.mxu0 %v313
    %559 = vmatpush.msra.mxu0 %v307
    %560 = vmatpush.msra.mxu0 %v301
    %561 = vmatpush.msra.mxu0 %v295
    %562 = vmatpush.msra.mxu0 %v289
    %563 = vmatmul.f32.gmra.mxu0 %v286
    %v564 = vpop.f32.mrf.mxu0
    %v565 = vadd.f32 %v531, %v564
    %566 = vdwg.mxu0
    %567 = vmatpush.msra.mxu0 %v475
    %568 = vmatpush.msra.mxu0 %v469
    %569 = vmatpush.msra.mxu0 %v463
    %570 = vmatpush.msra.mxu0 %v457
    %571 = vmatpush.msra.mxu0 %v451
    %572 = vmatpush.msra.mxu0 %v445
    %573 = vmatpush.msra.mxu0 %v439
    %574 = vmatpush.msra.mxu0 %v433
    %575 = vmatpush.msra.mxu0 %v427
    %576 = vmatpush.msra.mxu0 %v421
    %577 = vmatpush.msra.mxu0 %v415
    %578 = vmatpush.msra.mxu0 %v409
    %579 = vmatpush.msra.mxu0 %v403
    %580 = vmatpush.msra.mxu0 %v397
    %581 = vmatpush.msra.mxu0 %v391
    %582 = vmatpush.msra.mxu0 %v385
    %583 = vmatmul.f32.gmra.mxu0 %v287
    %v584 = vpop.f32.mrf.mxu0
    %v585 = vadd.f32 %v565, %v584
    %586 = vdwg.mxu0
    %587 = vmatpush.msra.mxu0 0.0
    %588 = vmatpush.msra.mxu0 0.0
    %589 = vmatpush.msra.mxu0 0.0
    %590 = vmatpush.msra.mxu0 0.0
    %591 = vmatpush.msra.mxu0 0.0
    %592 = vmatpush.msra.mxu0 0.0
    %593 = vmatpush.msra.mxu0 0.0
    %594 = vmatpush.msra.mxu0 0.0
    %595 = vmatpush.msra.mxu0 %v523
    %596 = vmatpush.msra.mxu0 %v517
    %597 = vmatpush.msra.mxu0 %v511
    %598 = vmatpush.msra.mxu0 %v505
    %599 = vmatpush.msra.mxu0 %v499
    %600 = vmatpush.msra.mxu0 %v493
    %601 = vmatpush.msra.mxu0 %v487
    %602 = vmatpush.msra.mxu0 %v481
    %603 = vmatmul.f32.gmra.mxu0 %v545
    %v604 = vpop.f32.mrf.mxu0
    %v605 = vadd.f32 %v585, %v604
    %606 = vdwg.mxu0
    %607 = vmatpush.msra.mxu0 %v380
    %608 = vmatpush.msra.mxu0 %v374
    %609 = vmatpush.msra.mxu0 %v368
    %610 = vmatpush.msra.mxu0 %v362
    %611 = vmatpush.msra.mxu0 %v356
    %612 = vmatpush.msra.mxu0 %v350
    %613 = vmatpush.msra.mxu0 %v344
    %614 = vmatpush.msra.mxu0 %v338
    %615 = vmatpush.msra.mxu0 %v332
    %616 = vmatpush.msra.mxu0 %v326
    %617 = vmatpush.msra.mxu0 %v320
    %618 = vmatpush.msra.mxu0 %v314
    %619 = vmatpush.msra.mxu0 %v308
    %620 = vmatpush.msra.mxu0 %v302
    %621 = vmatpush.msra.mxu0 %v296
    %622 = vmatpush.msra.mxu0 %v290
    %623 = vmatmul.f32.gmra.mxu0 %v286
    %v624 = vpop.f32.mrf.mxu0
    %v625 = vadd.f32 %v532, %v624
    %626 = vdwg.mxu0
    %627 = vmatpush.msra.mxu0 %v476
    %628 = vmatpush.msra.mxu0 %v470
    %629 = vmatpush.msra.mxu0 %v464
    %630 = vmatpush.msra.mxu0 %v458
    %631 = vmatpush.msra.mxu0 %v452
    %632 = vmatpush.msra.mxu0 %v446
    %633 = vmatpush.msra.mxu0 %v440
    %634 = vmatpush.msra.mxu0 %v434
    %635 = vmatpush.msra.mxu0 %v428
    %636 = vmatpush.msra.mxu0 %v422
    %637 = vmatpush.msra.mxu0 %v416
    %638 = vmatpush.msra.mxu0 %v410
    %639 = vmatpush.msra.mxu0 %v404
    %640 = vmatpush.msra.mxu0 %v398
    %641 = vmatpush.msra.mxu0 %v392
    %642 = vmatpush.msra.mxu0 %v386
    %643 = vmatmul.f32.gmra.mxu0 %v287
    %v644 = vpop.f32.mrf.mxu0
    %v645 = vadd.f32 %v625, %v644
    %646 = vdwg.mxu0
    %647 = vmatpush.msra.mxu0 0.0
    %648 = vmatpush.msra.mxu0 0.0
    %649 = vmatpush.msra.mxu0 0.0
    %650 = vmatpush.msra.mxu0 0.0
    %651 = vmatpush.msra.mxu0 0.0
    %652 = vmatpush.msra.mxu0 0.0
    %653 = vmatpush.msra.mxu0 0.0
    %654 = vmatpush.msra.mxu0 0.0
    %655 = vmatpush.msra.mxu0 %v524
    %656 = vmatpush.msra.mxu0 %v518
    %657 = vmatpush.msra.mxu0 %v512
    %658 = vmatpush.msra.mxu0 %v506
    %659 = vmatpush.msra.mxu0 %v500
    %660 = vmatpush.msra.mxu0 %v494
    %661 = vmatpush.msra.mxu0 %v488
    %662 = vmatpush.msra.mxu0 %v482
    %663 = vmatmul.f32.gmra.mxu0 %v545
    %v664 = vpop.f32.mrf.mxu0
    %v665 = vadd.f32 %v645, %v664
    %666 = vdwg.mxu0
    %667 = vmatpush.msra.mxu0 %v381
    %668 = vmatpush.msra.mxu0 %v375
    %669 = vmatpush.msra.mxu0 %v369
    %670 = vmatpush.msra.mxu0 %v363
    %671 = vmatpush.msra.mxu0 %v357
    %672 = vmatpush.msra.mxu0 %v351
    %673 = vmatpush.msra.mxu0 %v345
    %674 = vmatpush.msra.mxu0 %v339
    %675 = vmatpush.msra.mxu0 %v333
    %676 = vmatpush.msra.mxu0 %v327
    %677 = vmatpush.msra.mxu0 %v321
    %678 = vmatpush.msra.mxu0 %v315
    %679 = vmatpush.msra.mxu0 %v309
    %680 = vmatpush.msra.mxu0 %v303
    %681 = vmatpush.msra.mxu0 %v297
    %682 = vmatpush.msra.mxu0 %v291
    %683 = vmatmul.f32.gmra.mxu0 %v286
    %v684 = vpop.f32.mrf.mxu0
    %v685 = vadd.f32 %v533, %v684
    %686 = vdwg.mxu0
    %687 = vmatpush.msra.mxu0 %v477
    %688 = vmatpush.msra.mxu0 %v471
    %689 = vmatpush.msra.mxu0 %v465
    %690 = vmatpush.msra.mxu0 %v459
    %691 = vmatpush.msra.mxu0 %v453
    %692 = vmatpush.msra.mxu0 %v447
    %693 = vmatpush.msra.mxu0 %v441
    %694 = vmatpush.msra.mxu0 %v435
    %695 = vmatpush.msra.mxu0 %v429
    %696 = vmatpush.msra.mxu0 %v423
    %697 = vmatpush.msra.mxu0 %v417
    %698 = vmatpush.msra.mxu0 %v411
    %699 = vmatpush.msra.mxu0 %v405
    %700 = vmatpush.msra.mxu0 %v399
    %701 = vmatpush.msra.mxu0 %v393
    %702 = vmatpush.msra.mxu0 %v387
    %703 = vmatmul.f32.gmra.mxu0 %v287
    %v704 = vpop.f32.mrf.mxu0
    %v705 = vadd.f32 %v685, %v704
    %706 = vdwg.mxu0
    %707 = vmatpush.msra.mxu0 0.0
    %708 = vmatpush.msra.mxu0 0.0
    %709 = vmatpush.msra.mxu0 0.0
    %710 = vmatpush.msra.mxu0 0.0
    %711 = vmatpush.msra.mxu0 0.0
    %712 = vmatpush.msra.mxu0 0.0
    %713 = vmatpush.msra.mxu0 0.0
    %714 = vmatpush.msra.mxu0 0.0
    %715 = vmatpush.msra.mxu0 %v525
    %716 = vmatpush.msra.mxu0 %v519
    %717 = vmatpush.msra.mxu0 %v513
    %718 = vmatpush.msra.mxu0 %v507
    %719 = vmatpush.msra.mxu0 %v501
    %720 = vmatpush.msra.mxu0 %v495
    %721 = vmatpush.msra.mxu0 %v489
    %722 = vmatpush.msra.mxu0 %v483
    %723 = vmatmul.f32.gmra.mxu0 %v545
    %v724 = vpop.f32.mrf.mxu0
    %v725 = vadd.f32 %v705, %v724
    %726 = vdwg.mxu0
    %727 = vmatpush.msra.mxu0 %v382
    %728 = vmatpush.msra.mxu0 %v376
    %729 = vmatpush.msra.mxu0 %v370
    %730 = vmatpush.msra.mxu0 %v364
    %731 = vmatpush.msra.mxu0 %v358
    %732 = vmatpush.msra.mxu0 %v352
    %733 = vmatpush.msra.mxu0 %v346
    %734 = vmatpush.msra.mxu0 %v340
    %735 = vmatpush.msra.mxu0 %v334
    %736 = vmatpush.msra.mxu0 %v328
    %737 = vmatpush.msra.mxu0 %v322
    %738 = vmatpush.msra.mxu0 %v316
    %739 = vmatpush.msra.mxu0 %v310
    %740 = vmatpush.msra.mxu0 %v304
    %741 = vmatpush.msra.mxu0 %v298
    %742 = vmatpush.msra.mxu0 %v292
    %743 = vmatmul.f32.gmra.mxu0 %v286
    %v744 = vpop.f32.mrf.mxu0
    %v745 = vadd.f32 %v534, %v744
    %746 = vdwg.mxu0
    %747 = vmatpush.msra.mxu0 %v478
    %748 = vmatpush.msra.mxu0 %v472
    %749 = vmatpush.msra.mxu0 %v466
    %750 = vmatpush.msra.mxu0 %v460
    %751 = vmatpush.msra.mxu0 %v454
    %752 = vmatpush.msra.mxu0 %v448
    %753 = vmatpush.msra.mxu0 %v442
    %754 = vmatpush.msra.mxu0 %v436
    %755 = vmatpush.msra.mxu0 %v430
    %756 = vmatpush.msra.mxu0 %v424
    %757 = vmatpush.msra.mxu0 %v418
    %758 = vmatpush.msra.mxu0 %v412
    %759 = vmatpush.msra.mxu0 %v406
    %760 = vmatpush.msra.mxu0 %v400
    %761 = vmatpush.msra.mxu0 %v394
    %762 = vmatpush.msra.mxu0 %v388
    %763 = vmatmul.f32.gmra.mxu0 %v287
    %v764 = vpop.f32.mrf.mxu0
    %v765 = vadd.f32 %v745, %v764
    %766 = vdwg.mxu0
    %767 = vmatpush.msra.mxu0 0.0
    %768 = vmatpush.msra.mxu0 0.0
    %769 = vmatpush.msra.mxu0 0.0
    %770 = vmatpush.msra.mxu0 0.0
    %771 = vmatpush.msra.mxu0 0.0
    %772 = vmatpush.msra.mxu0 0.0
    %773 = vmatpush.msra.mxu0 0.0
    %774 = vmatpush.msra.mxu0 0.0
    %775 = vmatpush.msra.mxu0 %v526
    %776 = vmatpush.msra.mxu0 %v520
    %777 = vmatpush.msra.mxu0 %v514
    %778 = vmatpush.msra.mxu0 %v508
    %779 = vmatpush.msra.mxu0 %v502
    %780 = vmatpush.msra.mxu0 %v496
    %781 = vmatpush.msra.mxu0 %v490
    %782 = vmatpush.msra.mxu0 %v484
    %783 = vmatmul.f32.gmra.mxu0 %v545
    %v784 = vpop.f32.mrf.mxu0
    %v785 = vadd.f32 %v765, %v784
    %786 = vdwg.mxu0
    %787 = vmatpush.msra.mxu0 %v383
    %788 = vmatpush.msra.mxu0 %v377
    %789 = vmatpush.msra.mxu0 %v371
    %790 = vmatpush.msra.mxu0 %v365
    %791 = vmatpush.msra.mxu0 %v359
    %792 = vmatpush.msra.mxu0 %v353
    %793 = vmatpush.msra.mxu0 %v347
    %794 = vmatpush.msra.mxu0 %v341
    %795 = vmatpush.msra.mxu0 %v335
    %796 = vmatpush.msra.mxu0 %v329
    %797 = vmatpush.msra.mxu0 %v323
    %798 = vmatpush.msra.mxu0 %v317
    %799 = vmatpush.msra.mxu0 %v311
    %800 = vmatpush.msra.mxu0 %v305
    %801 = vmatpush.msra.mxu0 %v299
    %802 = vmatpush.msra.mxu0 %v293
    %803 = vmatmul.f32.gmra.mxu0 %v286
    %v804 = vpop.f32.mrf.mxu0
    %v805 = vadd.f32 %v535, %v804
    %806 = vdwg.mxu0
    %807 = vmatpush.msra.mxu0 %v479
    %808 = vmatpush.msra.mxu0 %v473
    %809 = vmatpush.msra.mxu0 %v467
    %810 = vmatpush.msra.mxu0 %v461
    %811 = vmatpush.msra.mxu0 %v455
    %812 = vmatpush.msra.mxu0 %v449
    %813 = vmatpush.msra.mxu0 %v443
    %814 = vmatpush.msra.mxu0 %v437
    %815 = vmatpush.msra.mxu0 %v431
    %816 = vmatpush.msra.mxu0 %v425
    %817 = vmatpush.msra.mxu0 %v419
    %818 = vmatpush.msra.mxu0 %v413
    %819 = vmatpush.msra.mxu0 %v407
    %820 = vmatpush.msra.mxu0 %v401
    %821 = vmatpush.msra.mxu0 %v395
    %822 = vmatpush.msra.mxu0 %v389
    %823 = vmatmul.f32.gmra.mxu0 %v287
    %v824 = vpop.f32.mrf.mxu0
    %v825 = vadd.f32 %v805, %v824
    %826 = vdwg.mxu0
    %827 = vmatpush.msra.mxu0 0.0
    %828 = vmatpush.msra.mxu0 0.0
    %829 = vmatpush.msra.mxu0 0.0
    %830 = vmatpush.msra.mxu0 0.0
    %831 = vmatpush.msra.mxu0 0.0
    %832 = vmatpush.msra.mxu0 0.0
    %833 = vmatpush.msra.mxu0 0.0
    %834 = vmatpush.msra.mxu0 0.0
    %835 = vmatpush.msra.mxu0 %v527
    %836 = vmatpush.msra.mxu0 %v521
    %837 = vmatpush.msra.mxu0 %v515
    %838 = vmatpush.msra.mxu0 %v509
    %839 = vmatpush.msra.mxu0 %v503
    %840 = vmatpush.msra.mxu0 %v497
    %841 = vmatpush.msra.mxu0 %v491
    %842 = vmatpush.msra.mxu0 %v485
    %843 = vmatmul.f32.gmra.mxu0 %v545
    %v844 = vpop.f32.mrf.mxu0
    %v845 = vadd.f32 %v825, %v844
    %846 = vdwg.mxu0
    %847 = vmatpush.msra.mxu0 %v384
    %848 = vmatpush.msra.mxu0 %v378
    %849 = vmatpush.msra.mxu0 %v372
    %850 = vmatpush.msra.mxu0 %v366
    %851 = vmatpush.msra.mxu0 %v360
    %852 = vmatpush.msra.mxu0 %v354
    %853 = vmatpush.msra.mxu0 %v348
    %854 = vmatpush.msra.mxu0 %v342
    %855 = vmatpush.msra.mxu0 %v336
    %856 = vmatpush.msra.mxu0 %v330
    %857 = vmatpush.msra.mxu0 %v324
    %858 = vmatpush.msra.mxu0 %v318
    %859 = vmatpush.msra.mxu0 %v312
    %860 = vmatpush.msra.mxu0 %v306
    %861 = vmatpush.msra.mxu0 %v300
    %862 = vmatpush.msra.mxu0 %v294
    %863 = vmatmul.f32.gmra.mxu0 %v286
    %v864 = vpop.f32.mrf.mxu0
    %v865 = vadd.f32 %v536, %v864
    %866 = vdwg.mxu0
    %867 = vmatpush.msra.mxu0 %v480
    %868 = vmatpush.msra.mxu0 %v474
    %869 = vmatpush.msra.mxu0 %v468
    %870 = vmatpush.msra.mxu0 %v462
    %871 = vmatpush.msra.mxu0 %v456
    %872 = vmatpush.msra.mxu0 %v450
    %873 = vmatpush.msra.mxu0 %v444
    %874 = vmatpush.msra.mxu0 %v438
    %875 = vmatpush.msra.mxu0 %v432
    %876 = vmatpush.msra.mxu0 %v426
    %877 = vmatpush.msra.mxu0 %v420
    %878 = vmatpush.msra.mxu0 %v414
    %879 = vmatpush.msra.mxu0 %v408
    %880 = vmatpush.msra.mxu0 %v402
    %881 = vmatpush.msra.mxu0 %v396
    %882 = vmatpush.msra.mxu0 %v390
    %883 = vmatmul.f32.gmra.mxu0 %v287
    %v884 = vpop.f32.mrf.mxu0
    %v885 = vadd.f32 %v865, %v884
    %886 = vdwg.mxu0
    %887 = vmatpush.msra.mxu0 0.0
    %888 = vmatpush.msra.mxu0 0.0
    %889 = vmatpush.msra.mxu0 0.0
    %890 = vmatpush.msra.mxu0 0.0
    %891 = vmatpush.msra.mxu0 0.0
    %892 = vmatpush.msra.mxu0 0.0
    %893 = vmatpush.msra.mxu0 0.0
    %894 = vmatpush.msra.mxu0 0.0
    %895 = vmatpush.msra.mxu0 %v528
    %896 = vmatpush.msra.mxu0 %v522
    %897 = vmatpush.msra.mxu0 %v516
    %898 = vmatpush.msra.mxu0 %v510
    %899 = vmatpush.msra.mxu0 %v504
    %900 = vmatpush.msra.mxu0 %v498
    %901 = vmatpush.msra.mxu0 %v492
    %902 = vmatpush.msra.mxu0 %v486
    %903 = vmatmul.f32.gmra.mxu0 %v545
    %v904 = vpop.f32.mrf.mxu0
    %v905 = vadd.f32 %v885, %v904
    %906 = vdwg.mxu0
    %v907 = vand.u32 2147483647, %v605
    %v908 = vand.u32 2147483647, %v665
    %v909 = vld [vmem:[#allocation13] sm:$0xff]
    %v910 = vld [vmem:[#allocation13 + $0x8] sm:$0xff]
    %v911 = vld [vmem:[#allocation13 + $0x10] sm:$0xff]
    %v912 = vld [vmem:[#allocation13 + $0x18] sm:$0xff]
    %vm913 = vcmask 64512
    %v915 = vsel %vm913, %v183, 0
    %917 = vmatpush.msra.mxu0 0.0
    %918 = vmatpush.msra.mxu0 0.0
    %919 = vmatpush.msra.mxu0 0.0
    %920 = vmatpush.msra.mxu0 0.0
    %921 = vmatpush.msra.mxu0 0.0
    %922 = vmatpush.msra.mxu0 0.0
    %923 = vmatpush.msra.mxu0 0.0
    %924 = vmatpush.msra.mxu0 0.0
    %925 = vmatpush.msra.mxu0 0.0
    %926 = vmatpush.msra.mxu0 0.0
    %927 = vmatpush.msra.mxu0 0.0
    %928 = vmatpush.msra.mxu0 0.0
    %929 = vmatpush.msra.mxu0 0.0
    %930 = vmatpush.msra.mxu0 0.0
    %931 = vmatpush.msra.mxu0 0.0
    %932 = vmatpush.msra.mxu0 %v909
    %933 = vmatmul.f32.gmra.mxu0 %v915
    %v934 = vpop.f32.mrf.mxu0
    %v935 = vadd.f32 0.0, %v934
    %936 = vdwg.mxu0
    %937 = vmatpush.msra.mxu0 0.0
    %938 = vmatpush.msra.mxu0 0.0
    %939 = vmatpush.msra.mxu0 0.0
    %940 = vmatpush.msra.mxu0 0.0
    %941 = vmatpush.msra.mxu0 0.0
    %942 = vmatpush.msra.mxu0 0.0
    %943 = vmatpush.msra.mxu0 0.0
    %944 = vmatpush.msra.mxu0 0.0
    %945 = vmatpush.msra.mxu0 0.0
    %946 = vmatpush.msra.mxu0 0.0
    %947 = vmatpush.msra.mxu0 0.0
    %948 = vmatpush.msra.mxu0 0.0
    %949 = vmatpush.msra.mxu0 0.0
    %950 = vmatpush.msra.mxu0 0.0
    %951 = vmatpush.msra.mxu0 0.0
    %952 = vmatpush.msra.mxu0 %v910
    %953 = vmatmul.f32.gmra.mxu0 %v915
    %v954 = vpop.f32.mrf.mxu0
    %v955 = vadd.f32 0.0, %v954
    %956 = vdwg.mxu0
    %957 = vmatpush.msra.mxu0 0.0
    %958 = vmatpush.msra.mxu0 0.0
    %959 = vmatpush.msra.mxu0 0.0
    %960 = vmatpush.msra.mxu0 0.0
    %961 = vmatpush.msra.mxu0 0.0
    %962 = vmatpush.msra.mxu0 0.0
    %963 = vmatpush.msra.mxu0 0.0
    %964 = vmatpush.msra.mxu0 0.0
    %965 = vmatpush.msra.mxu0 0.0
    %966 = vmatpush.msra.mxu0 0.0
    %967 = vmatpush.msra.mxu0 0.0
    %968 = vmatpush.msra.mxu0 0.0
    %969 = vmatpush.msra.mxu0 0.0
    %970 = vmatpush.msra.mxu0 0.0
    %971 = vmatpush.msra.mxu0 0.0
    %972 = vmatpush.msra.mxu0 %v911
    %973 = vmatmul.f32.gmra.mxu0 %v915
    %v974 = vpop.f32.mrf.mxu0
    %v975 = vadd.f32 0.0, %v974
    %976 = vdwg.mxu0
    %977 = vmatpush.msra.mxu0 0.0
    %978 = vmatpush.msra.mxu0 0.0
    %979 = vmatpush.msra.mxu0 0.0
    %980 = vmatpush.msra.mxu0 0.0
    %981 = vmatpush.msra.mxu0 0.0
    %982 = vmatpush.msra.mxu0 0.0
    %983 = vmatpush.msra.mxu0 0.0
    %984 = vmatpush.msra.mxu0 0.0
    %985 = vmatpush.msra.mxu0 0.0
    %986 = vmatpush.msra.mxu0 0.0
    %987 = vmatpush.msra.mxu0 0.0
    %988 = vmatpush.msra.mxu0 0.0
    %989 = vmatpush.msra.mxu0 0.0
    %990 = vmatpush.msra.mxu0 0.0
    %991 = vmatpush.msra.mxu0 0.0
    %992 = vmatpush.msra.mxu0 %v912
    %993 = vmatmul.f32.gmra.mxu0 %v915
    %v994 = vpop.f32.mrf.mxu0
    %v995 = vadd.f32 0.0, %v994
    %996 = vdwg.mxu0
    %v997 = vmul.f32 %v955, %v725
    %v998 = vmul.f32 %v975, %v785
    %v999 = vld [vmem:[#allocation14] sm:$0xff]
    %v1000 = vld [vmem:[#allocation14 + $0x8] sm:$0xff]
    %v1001 = vld [vmem:[#allocation14 + $0x10] sm:$0xff]
    %v1002 = vld [vmem:[#allocation14 + $0x18] sm:$0xff]
    %v1003 = vld [vmem:[#allocation14 + $0x20] sm:$0xff]
    %v1004 = vld [vmem:[#allocation14 + $0x28] sm:$0xff]
    %v1005 = vld [vmem:[#allocation14 + $0x30] sm:$0xff]
    %v1006 = vld [vmem:[#allocation14 + $0x38] sm:$0xff]
    %v1007 = vld [vmem:[#allocation14 + $0x40] sm:$0xff]
    %v1008 = vld [vmem:[#allocation14 + $0x48] sm:$0xff]
    %v1009 = vld [vmem:[#allocation14 + $0x50] sm:$0xff]
    %v1010 = vld [vmem:[#allocation14 + $0x58] sm:$0xff]
    %v1011 = vld [vmem:[#allocation14 + $0x60] sm:$0xff]
    %v1012 = vld [vmem:[#allocation14 + $0x68] sm:$0xff]
    %v1013 = vld [vmem:[#allocation14 + $0x70] sm:$0xff]
    %v1014 = vld [vmem:[#allocation14 + $0x78] sm:$0xff]
    %v1015 = vld [vmem:[#allocation14 + $0x80] sm:$0xff]
    %v1016 = vld [vmem:[#allocation14 + $0x88] sm:$0xff]
    %v1017 = vld [vmem:[#allocation14 + $0x90] sm:$0xff]
    %v1018 = vld [vmem:[#allocation14 + $0x98] sm:$0xff]
    %v1019 = vld [vmem:[#allocation14 + $0xa0] sm:$0xff]
    %v1020 = vld [vmem:[#allocation14 + $0xa8] sm:$0xff]
    %v1021 = vld [vmem:[#allocation14 + $0xb0] sm:$0xff]
    %v1022 = vld [vmem:[#allocation14 + $0xb8] sm:$0xff]
    %v1023 = vld [vmem:[#allocation14 + $0xc0] sm:$0xff]
    %v1024 = vld [vmem:[#allocation14 + $0xc8] sm:$0xff]
    %v1025 = vld [vmem:[#allocation14 + $0xd0] sm:$0xff]
    %v1026 = vld [vmem:[#allocation14 + $0xd8] sm:$0xff]
    %v1027 = vld [vmem:[#allocation14 + $0xe0] sm:$0xff]
    %v1028 = vld [vmem:[#allocation14 + $0xe8] sm:$0xff]
    %v1029 = vld [vmem:[#allocation14 + $0xf0] sm:$0xff]
    %v1030 = vld [vmem:[#allocation14 + $0xf8] sm:$0xff]
    %1031 = vmatpush.msra.mxu0 %v1014
    %1032 = vmatpush.msra.mxu0 %v1013
    %1033 = vmatpush.msra.mxu0 %v1012
    %1034 = vmatpush.msra.mxu0 %v1011
    %1035 = vmatpush.msra.mxu0 %v1010
    %1036 = vmatpush.msra.mxu0 %v1009
    %1037 = vmatpush.msra.mxu0 %v1008
    %1038 = vmatpush.msra.mxu0 %v1007
    %1039 = vmatpush.msra.mxu0 %v1006
    %1040 = vmatpush.msra.mxu0 %v1005
    %1041 = vmatpush.msra.mxu0 %v1004
    %1042 = vmatpush.msra.mxu0 %v1003
    %1043 = vmatpush.msra.mxu0 %v1002
    %1044 = vmatpush.msra.mxu0 %v1001
    %1045 = vmatpush.msra.mxu0 %v1000
    %1046 = vmatpush.msra.mxu0 %v999
    %1047 = vmatmul.f32.gmra.mxu0 %v997
    %v1048 = vpop.f32.mrf.mxu0
    %v1049 = vadd.f32 0.0, %v1048
    %1050 = vdwg.mxu0
    %1051 = vmatpush.msra.mxu0 %v1030
    %1052 = vmatpush.msra.mxu0 %v1029
    %1053 = vmatpush.msra.mxu0 %v1028
    %1054 = vmatpush.msra.mxu0 %v1027
    %1055 = vmatpush.msra.mxu0 %v1026
    %1056 = vmatpush.msra.mxu0 %v1025
    %1057 = vmatpush.msra.mxu0 %v1024
    %1058 = vmatpush.msra.mxu0 %v1023
    %1059 = vmatpush.msra.mxu0 %v1022
    %1060 = vmatpush.msra.mxu0 %v1021
    %1061 = vmatpush.msra.mxu0 %v1020
    %1062 = vmatpush.msra.mxu0 %v1019
    %1063 = vmatpush.msra.mxu0 %v1018
    %1064 = vmatpush.msra.mxu0 %v1017
    %1065 = vmatpush.msra.mxu0 %v1016
    %1066 = vmatpush.msra.mxu0 %v1015
    %1067 = vmatmul.f32.gmra.mxu0 %v998
    %v1068 = vpop.f32.mrf.mxu0
    %v1069 = vadd.f32 %v1049, %v1068
    %1070 = vdwg.mxu0
    %v1071 = vmul.f32 %v935, %v907
    %v1072 = vadd.f32 %v1071, %v1069
    %v1073 = vadd.f32 %v1072, %v224
    %vm1074 = vcmp.gt.f32.partialorder %v1073, 0.0
    %v1075 = vmul.f32 %v1073, 1.442695
    %v1076 = vpow.pop %v1075
    %v1077 = vsub.f32 %v1076, 1.0
    %v1078 = vsel %vm1074, %v1073, %v1077
    %v1079 = vmul.f32 %v1078, %v908
    %v1080 = vld [vmem:[#allocation16] sm:$0xff]
    %v1081 = vld [vmem:[#allocation16 + $0x8] sm:$0xff]
    %v1082 = vld [vmem:[#allocation16 + $0x10] sm:$0xff]
    %v1083 = vld [vmem:[#allocation16 + $0x18] sm:$0xff]
    %v1084 = vld [vmem:[#allocation16 + $0x20] sm:$0xff]
    %v1085 = vld [vmem:[#allocation16 + $0x28] sm:$0xff]
    %v1086 = vld [vmem:[#allocation16 + $0x30] sm:$0xff]
    %v1087 = vld [vmem:[#allocation16 + $0x38] sm:$0xff]
    %v1088 = vld [vmem:[#allocation16 + $0x40] sm:$0xff]
    %v1089 = vld [vmem:[#allocation16 + $0x48] sm:$0xff]
    %v1090 = vld [vmem:[#allocation16 + $0x50] sm:$0xff]
    %v1091 = vld [vmem:[#allocation16 + $0x58] sm:$0xff]
    %v1092 = vld [vmem:[#allocation16 + $0x60] sm:$0xff]
    %v1093 = vld [vmem:[#allocation16 + $0x68] sm:$0xff]
    %v1094 = vld [vmem:[#allocation16 + $0x70] sm:$0xff]
    %v1095 = vld [vmem:[#allocation16 + $0x78] sm:$0xff]
    %v1096 = vmul.f32 %v995, %v845
    %v1097 = vld [vmem:[#allocation17] sm:$0xff]
    %v1098 = vld [vmem:[#allocation17 + $0x8] sm:$0xff]
    %v1099 = vld [vmem:[#allocation17 + $0x10] sm:$0xff]
    %v1100 = vld [vmem:[#allocation17 + $0x18] sm:$0xff]
    %v1101 = vld [vmem:[#allocation17 + $0x20] sm:$0xff]
    %v1102 = vld [vmem:[#allocation17 + $0x28] sm:$0xff]
    %v1103 = vld [vmem:[#allocation17 + $0x30] sm:$0xff]
    %v1104 = vld [vmem:[#allocation17 + $0x38] sm:$0xff]
    %v1105 = vld [vmem:[#allocation17 + $0x40] sm:$0xff]
    %v1106 = vld [vmem:[#allocation17 + $0x48] sm:$0xff]
    %v1107 = vld [vmem:[#allocation17 + $0x50] sm:$0xff]
    %v1108 = vld [vmem:[#allocation17 + $0x58] sm:$0xff]
    %v1109 = vld [vmem:[#allocation17 + $0x60] sm:$0xff]
    %v1110 = vld [vmem:[#allocation17 + $0x68] sm:$0xff]
    %v1111 = vld [vmem:[#allocation17 + $0x70] sm:$0xff]
    %v1112 = vld [vmem:[#allocation17 + $0x78] sm:$0xff]
    %1113 = vmatpush.msra.mxu0 %v1112
    %1114 = vmatpush.msra.mxu0 %v1111
    %1115 = vmatpush.msra.mxu0 %v1110
    %1116 = vmatpush.msra.mxu0 %v1109
    %1117 = vmatpush.msra.mxu0 %v1108
    %1118 = vmatpush.msra.mxu0 %v1107
    %1119 = vmatpush.msra.mxu0 %v1106
    %1120 = vmatpush.msra.mxu0 %v1105
    %1121 = vmatpush.msra.mxu0 %v1104
    %1122 = vmatpush.msra.mxu0 %v1103
    %1123 = vmatpush.msra.mxu0 %v1102
    %1124 = vmatpush.msra.mxu0 %v1101
    %1125 = vmatpush.msra.mxu0 %v1100
    %1126 = vmatpush.msra.mxu0 %v1099
    %1127 = vmatpush.msra.mxu0 %v1098
    %1128 = vmatpush.msra.mxu0 %v1097
    %1129 = vmatmul.f32.gmra.mxu0 %v1096
    %v1130 = vpop.f32.mrf.mxu0
    %v1131 = vadd.f32 0.0, %v1130
    %1132 = vdwg.mxu0
    %1133 = vmatpush.msra.mxu0 %v1095
    %1134 = vmatpush.msra.mxu0 %v1094
    %1135 = vmatpush.msra.mxu0 %v1093
    %1136 = vmatpush.msra.mxu0 %v1092
    %1137 = vmatpush.msra.mxu0 %v1091
    %1138 = vmatpush.msra.mxu0 %v1090
    %1139 = vmatpush.msra.mxu0 %v1089
    %1140 = vmatpush.msra.mxu0 %v1088
    %1141 = vmatpush.msra.mxu0 %v1087
    %1142 = vmatpush.msra.mxu0 %v1086
    %1143 = vmatpush.msra.mxu0 %v1085
    %1144 = vmatpush.msra.mxu0 %v1084
    %1145 = vmatpush.msra.mxu0 %v1083
    %1146 = vmatpush.msra.mxu0 %v1082
    %1147 = vmatpush.msra.mxu0 %v1081
    %1148 = vmatpush.msra.mxu0 %v1080
    %1149 = vmatmul.f32.gmra.mxu0 %v1079
    %v1150 = vpop.f32.mrf.mxu0
    %v1151 = vadd.f32 %v1131, %v1150
    %1152 = vdwg.mxu0
    %v1153 = vadd.f32 %v1151, %v905
    %1154 = vst [vmem:[#allocation19] sm:$0xff] %v1153
    // Predicated region
    $region82: #{tpu_custom_call.1} parent=1 // pred_check
      _
    $region83: #{tpu_custom_call.1} parent=1 // pred_check_branch
      %1156 = sbr.rel (0) target = $region85
    $region84: #{tpu_custom_call.1} parent=1 // pred_region
      %1158 = vsyncadd [#allocation4], 0
      %s1160 = sshll.u32 [#allocation19], 4
      %s1161 = int_to_ptr.vmem [resolvable:$true] %s1160
      %s1162 = sshll.u32 %s10, 4
      %s1163 = int_to_ptr.hbm [resolvable:$true] %s1162
      %1165 = dma.vmem_to_hbm [thread:$0]  %s1161, 128, %s1163, [#allocation4]
    $region85: #{tpu_custom_call.1} parent=1 // pred_fallthru
      _
    // Predicated region
    $region86: #{tpu_custom_call.1} parent=1 // pred_check
      _
    $region87: #{tpu_custom_call.1} parent=1 // pred_check_branch
      %1167 = sbr.rel (0) target = $region89
    $region88: #{tpu_custom_call.1} parent=1 // pred_region
      %1169 = dma.done [#allocation4], 128
    $region89: #{tpu_custom_call.1} parent=1 // pred_fallthru
      _
    %1170 = vsyncpa [#allocation3], 1
    %1171 = vsyncpa [#allocation6], 1
    %1172 = vsyncpa [#allocation9], 1
    %1173 = vsyncpa [#allocation12], 1
    %1174 = vsyncpa [#allocation15], 1
    %1175 = vsyncpa [#allocation18], 1
    %1176 = vsyncpa [#allocation4], 1

</llo_original>
